<compile_context>
chip_gen: v7x
topology: tpu7x:2x2x1
jax: 0.10.0
libtpu: 0.0.40
codegen_flags: <defaults>
</compile_context>

<pallas_src>
import math
import functools

import jax
import jax.numpy as jnp
from jax import lax
from jax.experimental import pallas as pl
from jax.experimental.pallas import tpu as pltpu


# ----------------------------------------------------------------------------
# Per-generation knobs (host / trace-time queries with safe fallbacks).
# ----------------------------------------------------------------------------
def _vmem_limit_bytes():
    # Never ask Mosaic for 100% of physical VMEM (v7x only has 64 MiB): leave
    # ~20% headroom for internal scratch / semaphores / pipeline buffers.
    try:
        cap = pltpu.get_tpu_info().vmem_capacity_bytes
    except Exception:
        cap = 64 * 1024 * 1024          # conservative fallback (fits any chip)
    return max(32 * 1024 * 1024, min(int(cap * 0.8), 110 * 1024 * 1024))


def _use_bf16_exp():
    # bf16 EUP exp is ~2x throughput on v6e/v7x; v5e (and older) has no bf16 EUP.
    try:
        kind = jax.devices()[0].device_kind.lower()
    except Exception:
        return False
    return not any(tag in kind for tag in ("v2", "v3", "v4", "v5"))


def _choose_q_tile(S):
    # >=256 rows keeps the Q/FFN matmuls MXU-filling on v6e/v7x; 128 is the
    # floor for v5e / awkward sequence lengths; tiny S collapses to one tile.
    for t in (256, 128):
        if S >= t and S % t == 0:
            return t
    return S


_BUFFERED = getattr(pl, "Buffered", None)


def _const_spec(shape, index_map):
    """BlockSpec for a constant-index (fetch-once) operand: single-buffered."""
    if _BUFFERED is not None:
        try:
            return pl.BlockSpec(shape, index_map, pipeline_mode=_BUFFERED(1))
        except (TypeError, ValueError):
            pass
    return pl.BlockSpec(shape, index_map)


# ----------------------------------------------------------------------------
# Pallas kernel: one transformer block for (batch element b, query tile qi).
# ----------------------------------------------------------------------------
def _transformer_block_kernel(num_heads, q_tile, use_bf16_exp,
                              x_ref, padq_ref, padk_ref,
                              ln1g_ref, ln1b_ref,
                              wq_ref, bq_ref, wk_ref, bk_ref, wv_ref, bv_ref,
                              wo_ref, bo_ref,
                              ln2g_ref, ln2b_ref,
                              w1_ref, b1_ref, w2_ref, b2_ref,
                              o_ref):
    x_full = x_ref[0]                        # (S, H) f32 residual stream
    S, H = x_full.shape
    nh = num_heads
    d_k = H // nh
    tq = q_tile
    scale = jnp.float32(1.0 / math.sqrt(d_k))

    def layer_norm(v, g, b):
        # codertimo-BERT LayerNorm: unbiased std, eps (1e-6) added to the std.
        mean = jnp.mean(v, axis=-1, keepdims=True)
        c = v - mean
        var = jnp.sum(c * c, axis=-1, keepdims=True) * (1.0 / (H - 1))
        inv_std = pl.reciprocal(jnp.sqrt(var) + 1e-6)      # exact; tiny tensor
        return g * c * inv_std + b

    def gelu(v):
        return 0.5 * v * (1.0 + jnp.tanh(
            math.sqrt(2.0 / math.pi) * (v + 0.044715 * v * v * v)))

    def split_heads(t, rows):                # (rows, H) -> (nh, rows, d_k)
        return jnp.swapaxes(t.reshape(rows, nh, d_k), 0, 1)

    # ---- Multi-head self-attention sublayer (pre-LN + residual), query-tiled ----
    # LN of the full sequence is needed for K/V; the query tile reuses a slice.
    xn_full = layer_norm(x_full, ln1g_ref[...], ln1b_ref[...]).astype(jnp.bfloat16)

    if tq == S:                              # single tile: no slicing needed
        x_tile = x_full
        xn_tile = xn_full
    else:
        q_start = pl.multiple_of(pl.program_id(1) * tq, tq)
        x_tile = lax.dynamic_slice_in_dim(x_full, q_start, tq, axis=0)
        xn_tile = lax.dynamic_slice_in_dim(xn_full, q_start, tq, axis=0)

    # K/V over the full sequence (recomputed per query tile to bound VMEM;
    # matmul shapes stay at full (S,H)x(H,H)), Q only for this tile.
    k = jnp.dot(xn_full, wk_ref[...], preferred_element_type=jnp.float32) + bk_ref[...]
    v = jnp.dot(xn_full, wv_ref[...], preferred_element_type=jnp.float32) + bv_ref[...]
    q = jnp.dot(xn_tile, wq_ref[...], preferred_element_type=jnp.float32) + bq_ref[...]
    q = q * scale          # fold 1/sqrt(d_k) into q (tq*H elems, not nh*tq*S)

    qh = split_heads(q, tq).astype(jnp.bfloat16)       # (nh, tq, d_k)
    kh = split_heads(k, S).astype(jnp.bfloat16)        # (nh, S,  d_k)
    vh = split_heads(v, S).astype(jnp.bfloat16)

    # Additive pad-mask bias: 0 where both query and key are real tokens,
    # -1e9 otherwise (equivalent to the reference masked_fill after softmax).
    pq = padq_ref[0]                         # (tq, 1) 1.0 = real token
    pk = padk_ref[0]                         # (1, S)
    bias = (pq * pk - 1.0) * jnp.float32(1e9)            # (tq, S)

    # Head-batched score matmul on the MXU (f32 accumulation) + mask bias.
    scores = jnp.einsum('hqd,hkd->hqk', qh, kh,
                        preferred_element_type=jnp.float32) + bias[None, :, :]

    # Softmax over the (fully resident) key range; EUP reciprocal for the denom.
    m = jnp.max(scores, axis=-1, keepdims=True)
    shifted = scores - m
    if use_bf16_exp:
        # args <= 0 after max-subtraction -> bf16 exp is numerically safe and
        # halves EUP / VMEM traffic of `e` on v6e/v7x.
        e = jnp.exp(shifted.astype(jnp.bfloat16))
        denom = jnp.sum(e, axis=-1, keepdims=True, dtype=jnp.float32)
        p = e * pl.reciprocal(denom, approx=True).astype(jnp.bfloat16)
    else:
        e = jnp.exp(shifted)
        denom = jnp.sum(e, axis=-1, keepdims=True)
        p = (e * pl.reciprocal(denom, approx=True)).astype(jnp.bfloat16)

    ctx = jnp.einsum('hqk,hkd->hqd', p, vh,
                     preferred_element_type=jnp.float32)   # (nh, tq, d_k)
    ctx = jnp.swapaxes(ctx, 0, 1).reshape(tq, H)            # (tq, H)

    attn_out = (jnp.dot(ctx.astype(jnp.bfloat16), wo_ref[...],
                        preferred_element_type=jnp.float32) + bo_ref[...])
    xr = x_tile + attn_out                                  # residual (f32)

    # ---- Position-wise feed-forward sublayer (pre-LN + residual) ----
    xn2 = layer_norm(xr, ln2g_ref[...], ln2b_ref[...]).astype(jnp.bfloat16)
    h1 = jnp.dot(xn2, w1_ref[...], preferred_element_type=jnp.float32) + b1_ref[...]
    h1 = gelu(h1).astype(jnp.bfloat16)
    ffn_out = (jnp.dot(h1, w2_ref[...],
                       preferred_element_type=jnp.float32) + b2_ref[...])
    o_ref[0] = xr + ffn_out


def transformer_block(x, pad_q, pad_k, p, num_heads):
    """One TransformerBlock. x: [B,S,H] f32; pad_q: [B,S,1]; pad_k: [B,1,S]."""
    B, S, H = x.shape
    F = p["w1"].shape[1]
    tq = _choose_q_tile(S)
    n_qt = S // tq

    # Constant-index blocks (weights / biases / LN params) are fetched once ->
    # single-buffered (halves ~27 MiB of double-buffered bf16 weights at H=768,
    # which is what lets the block fit v7x's 64 MiB VMEM).
    def const(shape):
        nd = len(shape)
        return _const_spec(shape, lambda b, qi, _nd=nd: (0,) * _nd)

    in_specs = [
        pl.BlockSpec((1, S, H), lambda b, qi: (b, 0, 0)),    # x (full seq for K/V)
        pl.BlockSpec((1, tq, 1), lambda b, qi: (b, qi, 0)),  # pad (query-tile side)
        pl.BlockSpec((1, 1, S), lambda b, qi: (b, 0, 0)),    # pad (key side)
        const((1, H)), const((1, H)),                        # ln1 gamma / beta
        const((H, H)), const((1, H)),                        # Wq, bq
        const((H, H)), const((1, H)),                        # Wk, bk
        const((H, H)), const((1, H)),                        # Wv, bv
        const((H, H)), const((1, H)),                        # Wo, bo
        const((1, H)), const((1, H)),                        # ln2 gamma / beta
        const((H, F)), const((1, F)),                        # W1, b1
        const((F, H)), const((1, H)),                        # W2, b2
    ]

    kernel = functools.partial(_transformer_block_kernel,
                               num_heads, tq, _use_bf16_exp())
    return pl.pallas_call(
        kernel,
        out_shape=jax.ShapeDtypeStruct((B, S, H), jnp.float32),
        grid=(B, n_qt),
        in_specs=in_specs,
        out_specs=pl.BlockSpec((1, tq, H), lambda b, qi: (b, qi, 0)),
        compiler_params=pltpu.CompilerParams(
            # batch and query-tile axes are both independent -> megacore can
            # split either (keeps both v7x TCs busy even at B=1 when n_qt>1).
            dimension_semantics=("parallel", "parallel"),
            vmem_limit_bytes=_vmem_limit_bytes()),
    )(x, pad_q, pad_k,
      p["ln1_g"], p["ln1_b"],
      p["wq"], p["bq"], p["wk"], p["bk"], p["wv"], p["bv"],
      p["wo"], p["bo"],
      p["ln2_g"], p["ln2_b"],
      p["w1"], p["b1"], p["w2"], p["b2"])


# ----------------------------------------------------------------------------
# Parameters (deterministic synthetic init) + embedding (plain-JAX glue).
# ----------------------------------------------------------------------------
def _sinusoidal_pe(max_len, d_model):
    pos = jnp.arange(max_len, dtype=jnp.float32)[:, None]
    div = jnp.exp(jnp.arange(0, d_model, 2, dtype=jnp.float32)
                  * (-math.log(10000.0) / d_model))
    pe = jnp.zeros((max_len, d_model), jnp.float32)
    pe = pe.at[:, 0::2].set(jnp.sin(pos * div))
    pe = pe.at[:, 1::2].set(jnp.cos(pos * div))
    return pe


def make_params(key, vocab_size, hidden, n_layers, max_len):
    keys = jax.random.split(key, 3 + n_layers)
    std = 0.02
    bf = lambda a: a.astype(jnp.bfloat16)   # MXU weights in bf16

    tok = std * jax.random.normal(keys[0], (vocab_size, hidden), jnp.float32)
    tok = tok.at[0].set(0.0)                # padding_idx=0
    seg = std * jax.random.normal(keys[1], (3, hidden), jnp.float32)
    seg = seg.at[0].set(0.0)                # padding_idx=0
    pos = _sinusoidal_pe(max_len, hidden)

    layers = []
    for li in range(n_layers):
        lk = jax.random.split(keys[3 + li], 8)
        F = 4 * hidden
        layers.append(dict(
            ln1_g=jnp.ones((1, hidden), jnp.float32),
            ln1_b=jnp.zeros((1, hidden), jnp.float32),
            wq=bf(std * jax.random.normal(lk[0], (hidden, hidden), jnp.float32)),
            bq=jnp.zeros((1, hidden), jnp.float32),
            wk=bf(std * jax.random.normal(lk[1], (hidden, hidden), jnp.float32)),
            bk=jnp.zeros((1, hidden), jnp.float32),
            wv=bf(std * jax.random.normal(lk[2], (hidden, hidden), jnp.float32)),
            bv=jnp.zeros((1, hidden), jnp.float32),
            wo=bf(std * jax.random.normal(lk[3], (hidden, hidden), jnp.float32)),
            bo=jnp.zeros((1, hidden), jnp.float32),
            ln2_g=jnp.ones((1, hidden), jnp.float32),
            ln2_b=jnp.zeros((1, hidden), jnp.float32),
            w1=bf(std * jax.random.normal(lk[4], (hidden, F), jnp.float32)),
            b1=jnp.zeros((1, F), jnp.float32),
            w2=bf(std * jax.random.normal(lk[5], (F, hidden), jnp.float32)),
            b2=jnp.zeros((1, hidden), jnp.float32),
        ))
    return dict(tok_emb=tok, seg_emb=seg, pos_emb=pos, layers=layers)


@functools.partial(jax.jit, static_argnums=(3,))
def molbert_forward(params, x_ids, seg_ids, num_heads):
    """Mirrors MolBert.forward(x, segment_info, adj=None) in eval mode."""
    B, S = x_ids.shape

    # Only the [B,S] pad vector is shipped; the symmetric [S,S] mask
    # (temp_mask * temp_mask_t in the reference) is rebuilt inside the kernel.
    pad = (x_ids > 0).astype(jnp.float32)
    pad_q = pad[:, :, None]                                   # (B, S, 1)
    pad_k = pad[:, None, :]                                   # (B, 1, S)

    # MolBertEmbedding: token + sinusoidal position + segment (dropout = id).
    x = (params["tok_emb"][x_ids]
         + params["pos_emb"][None, :S, :]
         + params["seg_emb"][seg_ids])

    outputs = []
    for lp in params["layers"]:
        x = transformer_block(x, pad_q, pad_k, lp, num_heads)
        outputs.append(x)
    return x, outputs


# ----------------------------------------------------------------------------
if __name__ == "__main__":
    # NOTE: production configs should use H, F, S that are multiples of 128 so
    # blocks are lane/sublane dense; the toy shapes only exercise correctness.
    VOCAB, HIDDEN, N_LAYERS, N_HEADS = 32, 32, 2, 4
    B, S = 2, 8

    key = jax.random.PRNGKey(0)
    k_par, k_tok, k_seg = jax.random.split(key, 3)

    params = make_params(k_par, VOCAB, HIDDEN, N_LAYERS, max_len=64)

    x_ids = jax.random.randint(k_tok, (B, S), 0, VOCAB, dtype=jnp.int32)
    # segment ids in {1,2}, 0 on padding positions (padding_idx semantics)
    seg_ids = jax.random.randint(k_seg, (B, S), 1, 3, dtype=jnp.int32)
    seg_ids = jnp.where(x_ids > 0, seg_ids, 0)

    out, layer_outputs = molbert_forward(params, x_ids, seg_ids, N_HEADS)
    jax.block_until_ready(out)
    for o in layer_outputs:
        jax.block_until_ready(o)

    assert out.shape == (B, S, HIDDEN) and len(layer_outputs) == N_LAYERS
    assert bool(jnp.all(jnp.isfinite(out)))
    print("KERNEL_OK")
</pallas_src>

<mosaic_0001>
module attributes {stable_mosaic.version = 11 : i64} {
  func.func @_transformer_block_kernel(%arg0: i32, %arg1: i32, %arg2: memref<1x8x32xf32, #tpu.memory_space<vmem>>, %arg3: memref<1x8x1xf32, #tpu.memory_space<vmem>>, %arg4: memref<1x1x8xf32, #tpu.memory_space<vmem>>, %arg5: memref<1x32xf32, #tpu.memory_space<vmem>>, %arg6: memref<1x32xf32, #tpu.memory_space<vmem>>, %arg7: memref<32x32xbf16, #tpu.memory_space<vmem>>, %arg8: memref<1x32xf32, #tpu.memory_space<vmem>>, %arg9: memref<32x32xbf16, #tpu.memory_space<vmem>>, %arg10: memref<1x32xf32, #tpu.memory_space<vmem>>, %arg11: memref<32x32xbf16, #tpu.memory_space<vmem>>, %arg12: memref<1x32xf32, #tpu.memory_space<vmem>>, %arg13: memref<32x32xbf16, #tpu.memory_space<vmem>>, %arg14: memref<1x32xf32, #tpu.memory_space<vmem>>, %arg15: memref<1x32xf32, #tpu.memory_space<vmem>>, %arg16: memref<1x32xf32, #tpu.memory_space<vmem>>, %arg17: memref<32x128xbf16, #tpu.memory_space<vmem>>, %arg18: memref<1x128xf32, #tpu.memory_space<vmem>>, %arg19: memref<128x32xbf16, #tpu.memory_space<vmem>>, %arg20: memref<1x32xf32, #tpu.memory_space<vmem>>, %arg21: memref<1x8x32xf32, #tpu.memory_space<vmem>>) attributes {dimension_semantics = [#tpu.dimension_semantics<parallel>, #tpu.dimension_semantics<parallel>], iteration_bounds = array<i64: 2, 1>, scalar_prefetch = 0 : i64, scratch_operands = 0 : i64, tpu.core_type = #tpu.core_type<tc>, window_params = [{transform_indices = @transform_0, window_bounds = array<i64: 1, 8, 32>}, {transform_indices = @transform_1, window_bounds = array<i64: 1, 8, 1>}, {transform_indices = @transform_2, window_bounds = array<i64: 1, 1, 8>}, {pipeline_mode = #tpu.pipeline_mode<synchronous>, transform_indices = @transform_3, window_bounds = array<i64: 1, 32>}, {pipeline_mode = #tpu.pipeline_mode<synchronous>, transform_indices = @transform_4, window_bounds = array<i64: 1, 32>}, {pipeline_mode = #tpu.pipeline_mode<synchronous>, transform_indices = @transform_5, window_bounds = array<i64: 32, 32>}, {pipeline_mode = #tpu.pipeline_mode<synchronous>, transform_indices = @transform_6, window_bounds = array<i64: 1, 32>}, {pipeline_mode = #tpu.pipeline_mode<synchronous>, transform_indices = @transform_7, window_bounds = array<i64: 32, 32>}, {pipeline_mode = #tpu.pipeline_mode<synchronous>, transform_indices = @transform_8, window_bounds = array<i64: 1, 32>}, {pipeline_mode = #tpu.pipeline_mode<synchronous>, transform_indices = @transform_9, window_bounds = array<i64: 32, 32>}, {pipeline_mode = #tpu.pipeline_mode<synchronous>, transform_indices = @transform_10, window_bounds = array<i64: 1, 32>}, {pipeline_mode = #tpu.pipeline_mode<synchronous>, transform_indices = @transform_11, window_bounds = array<i64: 32, 32>}, {pipeline_mode = #tpu.pipeline_mode<synchronous>, transform_indices = @transform_12, window_bounds = array<i64: 1, 32>}, {pipeline_mode = #tpu.pipeline_mode<synchronous>, transform_indices = @transform_13, window_bounds = array<i64: 1, 32>}, {pipeline_mode = #tpu.pipeline_mode<synchronous>, transform_indices = @transform_14, window_bounds = array<i64: 1, 32>}, {pipeline_mode = #tpu.pipeline_mode<synchronous>, transform_indices = @transform_15, window_bounds = array<i64: 32, 128>}, {pipeline_mode = #tpu.pipeline_mode<synchronous>, transform_indices = @transform_16, window_bounds = array<i64: 1, 128>}, {pipeline_mode = #tpu.pipeline_mode<synchronous>, transform_indices = @transform_17, window_bounds = array<i64: 128, 32>}, {pipeline_mode = #tpu.pipeline_mode<synchronous>, transform_indices = @transform_18, window_bounds = array<i64: 1, 32>}, {transform_indices = @transform_19, window_bounds = array<i64: 1, 8, 32>}]} {
    %c0 = arith.constant 0 : index
    %c0_0 = arith.constant 0 : index
    %c0_1 = arith.constant 0 : index
    %0 = vector.load %arg2[%c0, %c0_0, %c0_1] : memref<1x8x32xf32, #tpu.memory_space<vmem>>, vector<1x8x32xf32>
    %1 = vector.shape_cast %0 : vector<1x8x32xf32> to vector<8x32xf32>
    %c0_2 = arith.constant 0 : index
    %c0_3 = arith.constant 0 : index
    %2 = vector.load %arg5[%c0_2, %c0_3] : memref<1x32xf32, #tpu.memory_space<vmem>>, vector<1x32xf32>
    %c0_4 = arith.constant 0 : index
    %c0_5 = arith.constant 0 : index
    %3 = vector.load %arg6[%c0_4, %c0_5] : memref<1x32xf32, #tpu.memory_space<vmem>>, vector<1x32xf32>
    %cst = arith.constant dense<0.000000e+00> : vector<8xf32>
    %4 = vector.multi_reduction <add>, %1, %cst [1] : vector<8x32xf32> to vector<8xf32>
    %5 = vector.shape_cast %4 : vector<8xf32> to vector<8x1xf32>
    %cst_6 = arith.constant 3.200000e+01 : f32
    %6 = vector.broadcast %cst_6 : f32 to vector<8x1xf32>
    %7 = arith.divf %5, %6 : vector<8x1xf32>
    %8 = vector.broadcast %7 : vector<8x1xf32> to vector<8x32xf32>
    %9 = arith.subf %1, %8 : vector<8x32xf32>
    %10 = arith.mulf %9, %9 : vector<8x32xf32>
    %cst_7 = arith.constant dense<0.000000e+00> : vector<8xf32>
    %11 = vector.multi_reduction <add>, %10, %cst_7 [1] : vector<8x32xf32> to vector<8xf32>
    %12 = vector.shape_cast %11 : vector<8xf32> to vector<8x1xf32>
    %cst_8 = arith.constant 0.0322580636 : f32
    %13 = vector.broadcast %cst_8 : f32 to vector<8x1xf32>
    %14 = arith.mulf %12, %13 : vector<8x1xf32>
    %15 = math.sqrt %14 : vector<8x1xf32>
    %cst_9 = arith.constant 9.99999997E-7 : f32
    %16 = vector.broadcast %cst_9 : f32 to vector<8x1xf32>
    %17 = arith.addf %15, %16 : vector<8x1xf32>
    %18 = tpu.reciprocal %17 : vector<8x1xf32> -> vector<8x1xf32>
    %19 = vector.broadcast %2 : vector<1x32xf32> to vector<8x32xf32>
    %20 = arith.mulf %19, %9 : vector<8x32xf32>
    %21 = vector.broadcast %18 : vector<8x1xf32> to vector<8x32xf32>
    %22 = arith.mulf %20, %21 : vector<8x32xf32>
    %23 = vector.broadcast %3 : vector<1x32xf32> to vector<8x32xf32>
    %24 = arith.addf %22, %23 : vector<8x32xf32>
    %25 = arith.truncf %24 : vector<8x32xf32> to vector<8x32xbf16>
    %c0_10 = arith.constant 0 : index
    %c0_11 = arith.constant 0 : index
    %26 = vector.load %arg9[%c0_10, %c0_11] : memref<32x32xbf16, #tpu.memory_space<vmem>>, vector<32x32xbf16>
    %cst_12 = arith.constant dense<0.000000e+00> : vector<8x32xf32>
    %27 = tpu.matmul %25, %26, %cst_12 {dimension_numbers = #tpu.dot_dimension_numbers<[1], [0], [0], [1], [0, 0, 1, 1], [], []>} : vector<8x32xbf16>, vector<32x32xbf16>, vector<8x32xf32> -> vector<8x32xf32>
    %c0_13 = arith.constant 0 : index
    %c0_14 = arith.constant 0 : index
    %28 = vector.load %arg10[%c0_13, %c0_14] : memref<1x32xf32, #tpu.memory_space<vmem>>, vector<1x32xf32>
    %29 = vector.broadcast %28 : vector<1x32xf32> to vector<8x32xf32>
    %30 = arith.addf %27, %29 : vector<8x32xf32>
    %c0_15 = arith.constant 0 : index
    %c0_16 = arith.constant 0 : index
    %31 = vector.load %arg11[%c0_15, %c0_16] : memref<32x32xbf16, #tpu.memory_space<vmem>>, vector<32x32xbf16>
    %cst_17 = arith.constant dense<0.000000e+00> : vector<8x32xf32>
    %32 = tpu.matmul %25, %31, %cst_17 {dimension_numbers = #tpu.dot_dimension_numbers<[1], [0], [0], [1], [0, 0, 1, 1], [], []>} : vector<8x32xbf16>, vector<32x32xbf16>, vector<8x32xf32> -> vector<8x32xf32>
    %c0_18 = arith.constant 0 : index
    %c0_19 = arith.constant 0 : index
    %33 = vector.load %arg12[%c0_18, %c0_19] : memref<1x32xf32, #tpu.memory_space<vmem>>, vector<1x32xf32>
    %34 = vector.broadcast %33 : vector<1x32xf32> to vector<8x32xf32>
    %35 = arith.addf %32, %34 : vector<8x32xf32>
    %c0_20 = arith.constant 0 : index
    %c0_21 = arith.constant 0 : index
    %36 = vector.load %arg7[%c0_20, %c0_21] : memref<32x32xbf16, #tpu.memory_space<vmem>>, vector<32x32xbf16>
    %cst_22 = arith.constant dense<0.000000e+00> : vector<8x32xf32>
    %37 = tpu.matmul %25, %36, %cst_22 {dimension_numbers = #tpu.dot_dimension_numbers<[1], [0], [0], [1], [0, 0, 1, 1], [], []>} : vector<8x32xbf16>, vector<32x32xbf16>, vector<8x32xf32> -> vector<8x32xf32>
    %c0_23 = arith.constant 0 : index
    %c0_24 = arith.constant 0 : index
    %38 = vector.load %arg8[%c0_23, %c0_24] : memref<1x32xf32, #tpu.memory_space<vmem>>, vector<1x32xf32>
    %39 = vector.broadcast %38 : vector<1x32xf32> to vector<8x32xf32>
    %40 = arith.addf %37, %39 : vector<8x32xf32>
    %cst_25 = arith.constant 0.353553385 : f32
    %41 = vector.broadcast %cst_25 : f32 to vector<8x32xf32>
    %42 = arith.mulf %40, %41 : vector<8x32xf32>
    %43 = vector.shape_cast %42 : vector<8x32xf32> to vector<8x4x8xf32>
    %44 = tpu.transpose %43, [1, 0, 2] : vector<8x4x8xf32> -> vector<4x8x8xf32>
    %45 = arith.truncf %44 : vector<4x8x8xf32> to vector<4x8x8xbf16>
    %46 = vector.shape_cast %30 : vector<8x32xf32> to vector<8x4x8xf32>
    %47 = tpu.transpose %46, [1, 0, 2] : vector<8x4x8xf32> -> vector<4x8x8xf32>
    %48 = arith.truncf %47 : vector<4x8x8xf32> to vector<4x8x8xbf16>
    %49 = vector.shape_cast %35 : vector<8x32xf32> to vector<8x4x8xf32>
    %50 = tpu.transpose %49, [1, 0, 2] : vector<8x4x8xf32> -> vector<4x8x8xf32>
    %51 = arith.truncf %50 : vector<4x8x8xf32> to vector<4x8x8xbf16>
    %c0_26 = arith.constant 0 : index
    %c0_27 = arith.constant 0 : index
    %c0_28 = arith.constant 0 : index
    %52 = vector.load %arg3[%c0_26, %c0_27, %c0_28] : memref<1x8x1xf32, #tpu.memory_space<vmem>>, vector<1x8x1xf32>
    %53 = vector.shape_cast %52 : vector<1x8x1xf32> to vector<8x1xf32>
    %c0_29 = arith.constant 0 : index
    %c0_30 = arith.constant 0 : index
    %c0_31 = arith.constant 0 : index
    %54 = vector.load %arg4[%c0_29, %c0_30, %c0_31] : memref<1x1x8xf32, #tpu.memory_space<vmem>>, vector<1x1x8xf32>
    %55 = vector.shape_cast %54 : vector<1x1x8xf32> to vector<1x8xf32>
    %56 = vector.broadcast %53 : vector<8x1xf32> to vector<8x8xf32>
    %57 = vector.broadcast %55 : vector<1x8xf32> to vector<8x8xf32>
    %58 = arith.mulf %56, %57 : vector<8x8xf32>
    %cst_32 = arith.constant 1.000000e+00 : f32
    %59 = vector.broadcast %cst_32 : f32 to vector<8x8xf32>
    %60 = arith.subf %58, %59 : vector<8x8xf32>
    %cst_33 = arith.constant 1.000000e+09 : f32
    %61 = vector.broadcast %cst_33 : f32 to vector<8x8xf32>
    %62 = arith.mulf %60, %61 : vector<8x8xf32>
    "tpu.trace_start"() <{level = 10 : i32, message = "hqd,hkd->hqk"}> : () -> ()
    %cst_34 = arith.constant dense<0.000000e+00> : vector<4x8x8xf32>
    %63 = tpu.matmul %45, %48, %cst_34 {dimension_numbers = #tpu.dot_dimension_numbers<[2], [2], [1], [1], [0, 0, 0, 1, 1, 1], [0], [0]>} : vector<4x8x8xbf16>, vector<4x8x8xbf16>, vector<4x8x8xf32> -> vector<4x8x8xf32>
    "tpu.trace_stop"() : () -> ()
    %64 = vector.shape_cast %62 : vector<8x8xf32> to vector<1x8x8xf32>
    %65 = vector.broadcast %64 : vector<1x8x8xf32> to vector<4x8x8xf32>
    %66 = arith.addf %63, %65 : vector<4x8x8xf32>
    %cst_35 = arith.constant dense<0xFF800000> : vector<4x8xf32>
    %67 = vector.multi_reduction <maximumf>, %66, %cst_35 [2] : vector<4x8x8xf32> to vector<4x8xf32>
    %68 = vector.shape_cast %67 : vector<4x8xf32> to vector<4x8x1xf32>
    %69 = vector.broadcast %68 : vector<4x8x1xf32> to vector<4x8x8xf32>
    %70 = arith.subf %66, %69 : vector<4x8x8xf32>
    %71 = arith.truncf %70 : vector<4x8x8xf32> to vector<4x8x8xbf16>
    %72 = math.exp %71 : vector<4x8x8xbf16>
    %73 = arith.extf %72 : vector<4x8x8xbf16> to vector<4x8x8xf32>
    %cst_36 = arith.constant dense<0.000000e+00> : vector<4x8xf32>
    %74 = vector.multi_reduction <add>, %73, %cst_36 [2] : vector<4x8x8xf32> to vector<4x8xf32>
    %75 = vector.shape_cast %74 : vector<4x8xf32> to vector<4x8x1xf32>
    %76 = tpu.reciprocal %75 {approx = true} : vector<4x8x1xf32> -> vector<4x8x1xf32>
    %77 = arith.truncf %76 : vector<4x8x1xf32> to vector<4x8x1xbf16>
    %78 = vector.broadcast %77 : vector<4x8x1xbf16> to vector<4x8x8xbf16>
    %79 = arith.mulf %72, %78 : vector<4x8x8xbf16>
    "tpu.trace_start"() <{level = 10 : i32, message = "hqk,hkd->hqd"}> : () -> ()
    %cst_37 = arith.constant dense<0.000000e+00> : vector<4x8x8xf32>
    %80 = tpu.matmul %79, %51, %cst_37 {dimension_numbers = #tpu.dot_dimension_numbers<[2], [1], [1], [2], [0, 0, 0, 1, 1, 2], [0], [0]>} : vector<4x8x8xbf16>, vector<4x8x8xbf16>, vector<4x8x8xf32> -> vector<4x8x8xf32>
    "tpu.trace_stop"() : () -> ()
    %81 = tpu.transpose %80, [1, 0, 2] : vector<4x8x8xf32> -> vector<8x4x8xf32>
    %82 = vector.shape_cast %81 : vector<8x4x8xf32> to vector<8x32xf32>
    %83 = arith.truncf %82 : vector<8x32xf32> to vector<8x32xbf16>
    %c0_38 = arith.constant 0 : index
    %c0_39 = arith.constant 0 : index
    %84 = vector.load %arg13[%c0_38, %c0_39] : memref<32x32xbf16, #tpu.memory_space<vmem>>, vector<32x32xbf16>
    %cst_40 = arith.constant dense<0.000000e+00> : vector<8x32xf32>
    %85 = tpu.matmul %83, %84, %cst_40 {dimension_numbers = #tpu.dot_dimension_numbers<[1], [0], [0], [1], [0, 0, 1, 1], [], []>} : vector<8x32xbf16>, vector<32x32xbf16>, vector<8x32xf32> -> vector<8x32xf32>
    %c0_41 = arith.constant 0 : index
    %c0_42 = arith.constant 0 : index
    %86 = vector.load %arg14[%c0_41, %c0_42] : memref<1x32xf32, #tpu.memory_space<vmem>>, vector<1x32xf32>
    %87 = vector.broadcast %86 : vector<1x32xf32> to vector<8x32xf32>
    %88 = arith.addf %85, %87 : vector<8x32xf32>
    %89 = arith.addf %1, %88 : vector<8x32xf32>
    %c0_43 = arith.constant 0 : index
    %c0_44 = arith.constant 0 : index
    %90 = vector.load %arg15[%c0_43, %c0_44] : memref<1x32xf32, #tpu.memory_space<vmem>>, vector<1x32xf32>
    %c0_45 = arith.constant 0 : index
    %c0_46 = arith.constant 0 : index
    %91 = vector.load %arg16[%c0_45, %c0_46] : memref<1x32xf32, #tpu.memory_space<vmem>>, vector<1x32xf32>
    %cst_47 = arith.constant dense<0.000000e+00> : vector<8xf32>
    %92 = vector.multi_reduction <add>, %89, %cst_47 [1] : vector<8x32xf32> to vector<8xf32>
    %93 = vector.shape_cast %92 : vector<8xf32> to vector<8x1xf32>
    %cst_48 = arith.constant 3.200000e+01 : f32
    %94 = vector.broadcast %cst_48 : f32 to vector<8x1xf32>
    %95 = arith.divf %93, %94 : vector<8x1xf32>
    %96 = vector.broadcast %95 : vector<8x1xf32> to vector<8x32xf32>
    %97 = arith.subf %89, %96 : vector<8x32xf32>
    %98 = arith.mulf %97, %97 : vector<8x32xf32>
    %cst_49 = arith.constant dense<0.000000e+00> : vector<8xf32>
    %99 = vector.multi_reduction <add>, %98, %cst_49 [1] : vector<8x32xf32> to vector<8xf32>
    %100 = vector.shape_cast %99 : vector<8xf32> to vector<8x1xf32>
    %cst_50 = arith.constant 0.0322580636 : f32
    %101 = vector.broadcast %cst_50 : f32 to vector<8x1xf32>
    %102 = arith.mulf %100, %101 : vector<8x1xf32>
    %103 = math.sqrt %102 : vector<8x1xf32>
    %cst_51 = arith.constant 9.99999997E-7 : f32
    %104 = vector.broadcast %cst_51 : f32 to vector<8x1xf32>
    %105 = arith.addf %103, %104 : vector<8x1xf32>
    %106 = tpu.reciprocal %105 : vector<8x1xf32> -> vector<8x1xf32>
    %107 = vector.broadcast %90 : vector<1x32xf32> to vector<8x32xf32>
    %108 = arith.mulf %107, %97 : vector<8x32xf32>
    %109 = vector.broadcast %106 : vector<8x1xf32> to vector<8x32xf32>
    %110 = arith.mulf %108, %109 : vector<8x32xf32>
    %111 = vector.broadcast %91 : vector<1x32xf32> to vector<8x32xf32>
    %112 = arith.addf %110, %111 : vector<8x32xf32>
    %113 = arith.truncf %112 : vector<8x32xf32> to vector<8x32xbf16>
    %c0_52 = arith.constant 0 : index
    %c0_53 = arith.constant 0 : index
    %114 = vector.load %arg17[%c0_52, %c0_53] : memref<32x128xbf16, #tpu.memory_space<vmem>>, vector<32x128xbf16>
    %cst_54 = arith.constant dense<0.000000e+00> : vector<8x128xf32>
    %115 = tpu.matmul %113, %114, %cst_54 {dimension_numbers = #tpu.dot_dimension_numbers<[1], [0], [0], [1], [0, 0, 1, 1], [], []>} : vector<8x32xbf16>, vector<32x128xbf16>, vector<8x128xf32> -> vector<8x128xf32>
    %c0_55 = arith.constant 0 : index
    %c0_56 = arith.constant 0 : index
    %116 = vector.load %arg18[%c0_55, %c0_56] : memref<1x128xf32, #tpu.memory_space<vmem>>, vector<1x128xf32>
    %117 = vector.broadcast %116 : vector<1x128xf32> to vector<8x128xf32>
    %118 = arith.addf %115, %117 : vector<8x128xf32>
    %cst_57 = arith.constant 5.000000e-01 : f32
    %119 = vector.broadcast %cst_57 : f32 to vector<8x128xf32>
    %120 = arith.mulf %119, %118 : vector<8x128xf32>
    %cst_58 = arith.constant 4.471500e-02 : f32
    %121 = vector.broadcast %cst_58 : f32 to vector<8x128xf32>
    %122 = arith.mulf %121, %118 : vector<8x128xf32>
    %123 = arith.mulf %122, %118 : vector<8x128xf32>
    %124 = arith.mulf %123, %118 : vector<8x128xf32>
    %125 = arith.addf %118, %124 : vector<8x128xf32>
    %cst_59 = arith.constant 0.797884583 : f32
    %126 = vector.broadcast %cst_59 : f32 to vector<8x128xf32>
    %127 = arith.mulf %126, %125 : vector<8x128xf32>
    %128 = math.tanh %127 : vector<8x128xf32>
    %cst_60 = arith.constant 1.000000e+00 : f32
    %129 = vector.broadcast %cst_60 : f32 to vector<8x128xf32>
    %130 = arith.addf %129, %128 : vector<8x128xf32>
    %131 = arith.mulf %120, %130 : vector<8x128xf32>
    %132 = arith.truncf %131 : vector<8x128xf32> to vector<8x128xbf16>
    %c0_61 = arith.constant 0 : index
    %c0_62 = arith.constant 0 : index
    %133 = vector.load %arg19[%c0_61, %c0_62] : memref<128x32xbf16, #tpu.memory_space<vmem>>, vector<128x32xbf16>
    %cst_63 = arith.constant dense<0.000000e+00> : vector<8x32xf32>
    %134 = tpu.matmul %132, %133, %cst_63 {dimension_numbers = #tpu.dot_dimension_numbers<[1], [0], [0], [1], [0, 0, 1, 1], [], []>} : vector<8x128xbf16>, vector<128x32xbf16>, vector<8x32xf32> -> vector<8x32xf32>
    %c0_64 = arith.constant 0 : index
    %c0_65 = arith.constant 0 : index
    %135 = vector.load %arg20[%c0_64, %c0_65] : memref<1x32xf32, #tpu.memory_space<vmem>>, vector<1x32xf32>
    %136 = vector.broadcast %135 : vector<1x32xf32> to vector<8x32xf32>
    %137 = arith.addf %134, %136 : vector<8x32xf32>
    %138 = arith.addf %89, %137 : vector<8x32xf32>
    %c0_66 = arith.constant 0 : index
    %c0_67 = arith.constant 0 : index
    %c0_68 = arith.constant 0 : index
    %139 = vector.load %arg21[%c0_66, %c0_67, %c0_68] : memref<1x8x32xf32, #tpu.memory_space<vmem>>, vector<1x8x32xf32>
    %140 = vector.shape_cast %139 : vector<1x8x32xf32> to vector<8x32xf32>
    %141 = vector.shape_cast %138 : vector<8x32xf32> to vector<1x8x32xf32>
    tpu.vector_store %arg21[%c0_66, %c0_67, %c0_68], %141 {strides = array<i32>} : memref<1x8x32xf32, #tpu.memory_space<vmem>>, vector<1x8x32xf32>,
    return
  }
  func.func @transform_0(%arg0: i32, %arg1: i32) -> (i32, i32, i32) {
    %c0_i32 = arith.constant 0 : i32
    %c0_i32_0 = arith.constant 0 : i32
    %c0_i32_1 = arith.constant 0 : i32
    return %arg0, %c0_i32, %c0_i32_0 : i32, i32, i32
  }
  func.func @transform_1(%arg0: i32, %arg1: i32) -> (i32, i32, i32) {
    %c0_i32 = arith.constant 0 : i32
    %c0_i32_0 = arith.constant 0 : i32
    return %arg0, %arg1, %c0_i32 : i32, i32, i32
  }
  func.func @transform_2(%arg0: i32, %arg1: i32) -> (i32, i32, i32) {
    %c0_i32 = arith.constant 0 : i32
    %c0_i32_0 = arith.constant 0 : i32
    %c0_i32_1 = arith.constant 0 : i32
    return %arg0, %c0_i32, %c0_i32_0 : i32, i32, i32
  }
  func.func @transform_3(%arg0: i32, %arg1: i32) -> (i32, i32) {
    %c0_i32 = arith.constant 0 : i32
    %c0_i32_0 = arith.constant 0 : i32
    %c0_i32_1 = arith.constant 0 : i32
    return %c0_i32, %c0_i32_0 : i32, i32
  }
  func.func @transform_4(%arg0: i32, %arg1: i32) -> (i32, i32) {
    %c0_i32 = arith.constant 0 : i32
    %c0_i32_0 = arith.constant 0 : i32
    %c0_i32_1 = arith.constant 0 : i32
    return %c0_i32, %c0_i32_0 : i32, i32
  }
  func.func @transform_5(%arg0: i32, %arg1: i32) -> (i32, i32) {
    %c0_i32 = arith.constant 0 : i32
    %c0_i32_0 = arith.constant 0 : i32
    %c0_i32_1 = arith.constant 0 : i32
    return %c0_i32, %c0_i32_0 : i32, i32
  }
  func.func @transform_6(%arg0: i32, %arg1: i32) -> (i32, i32) {
    %c0_i32 = arith.constant 0 : i32
    %c0_i32_0 = arith.constant 0 : i32
    %c0_i32_1 = arith.constant 0 : i32
    return %c0_i32, %c0_i32_0 : i32, i32
  }
  func.func @transform_7(%arg0: i32, %arg1: i32) -> (i32, i32) {
    %c0_i32 = arith.constant 0 : i32
    %c0_i32_0 = arith.constant 0 : i32
    %c0_i32_1 = arith.constant 0 : i32
    return %c0_i32, %c0_i32_0 : i32, i32
  }
  func.func @transform_8(%arg0: i32, %arg1: i32) -> (i32, i32) {
    %c0_i32 = arith.constant 0 : i32
    %c0_i32_0 = arith.constant 0 : i32
    %c0_i32_1 = arith.constant 0 : i32
    return %c0_i32, %c0_i32_0 : i32, i32
  }
  func.func @transform_9(%arg0: i32, %arg1: i32) -> (i32, i32) {
    %c0_i32 = arith.constant 0 : i32
    %c0_i32_0 = arith.constant 0 : i32
    %c0_i32_1 = arith.constant 0 : i32
    return %c0_i32, %c0_i32_0 : i32, i32
  }
  func.func @transform_10(%arg0: i32, %arg1: i32) -> (i32, i32) {
    %c0_i32 = arith.constant 0 : i32
    %c0_i32_0 = arith.constant 0 : i32
    %c0_i32_1 = arith.constant 0 : i32
    return %c0_i32, %c0_i32_0 : i32, i32
  }
  func.func @transform_11(%arg0: i32, %arg1: i32) -> (i32, i32) {
    %c0_i32 = arith.constant 0 : i32
    %c0_i32_0 = arith.constant 0 : i32
    %c0_i32_1 = arith.constant 0 : i32
    return %c0_i32, %c0_i32_0 : i32, i32
  }
  func.func @transform_12(%arg0: i32, %arg1: i32) -> (i32, i32) {
    %c0_i32 = arith.constant 0 : i32
    %c0_i32_0 = arith.constant 0 : i32
    %c0_i32_1 = arith.constant 0 : i32
    return %c0_i32, %c0_i32_0 : i32, i32
  }
  func.func @transform_13(%arg0: i32, %arg1: i32) -> (i32, i32) {
    %c0_i32 = arith.constant 0 : i32
    %c0_i32_0 = arith.constant 0 : i32
    %c0_i32_1 = arith.constant 0 : i32
    return %c0_i32, %c0_i32_0 : i32, i32
  }
  func.func @transform_14(%arg0: i32, %arg1: i32) -> (i32, i32) {
    %c0_i32 = arith.constant 0 : i32
    %c0_i32_0 = arith.constant 0 : i32
    %c0_i32_1 = arith.constant 0 : i32
    return %c0_i32, %c0_i32_0 : i32, i32
  }
  func.func @transform_15(%arg0: i32, %arg1: i32) -> (i32, i32) {
    %c0_i32 = arith.constant 0 : i32
    %c0_i32_0 = arith.constant 0 : i32
    %c0_i32_1 = arith.constant 0 : i32
    return %c0_i32, %c0_i32_0 : i32, i32
  }
  func.func @transform_16(%arg0: i32, %arg1: i32) -> (i32, i32) {
    %c0_i32 = arith.constant 0 : i32
    %c0_i32_0 = arith.constant 0 : i32
    %c0_i32_1 = arith.constant 0 : i32
    return %c0_i32, %c0_i32_0 : i32, i32
  }
  func.func @transform_17(%arg0: i32, %arg1: i32) -> (i32, i32) {
    %c0_i32 = arith.constant 0 : i32
    %c0_i32_0 = arith.constant 0 : i32
    %c0_i32_1 = arith.constant 0 : i32
    return %c0_i32, %c0_i32_0 : i32, i32
  }
  func.func @transform_18(%arg0: i32, %arg1: i32) -> (i32, i32) {
    %c0_i32 = arith.constant 0 : i32
    %c0_i32_0 = arith.constant 0 : i32
    %c0_i32_1 = arith.constant 0 : i32
    return %c0_i32, %c0_i32_0 : i32, i32
  }
  func.func @transform_19(%arg0: i32, %arg1: i32) -> (i32, i32, i32) {
    %c0_i32 = arith.constant 0 : i32
    %c0_i32_0 = arith.constant 0 : i32
    return %arg0, %arg1, %c0_i32 : i32, i32, i32
  }
}

</mosaic_0001>

<llo_original>
// kernel: molbert_forward.2
$region0: #{molbert_forward.2}
  #allocation0 [shape = 'u32[]', space=smem, size = 0x4, offset = 0x4, fixed_abs, tag = 'smem constant byte address 0x4 - core index']
  #allocation1 [shape = 'u32[144,128]{1,0:T(1,128)}', space=vmem, size = 0x12000, scoped, tag = 'internal scratch']
  %s0 = inlined_call_operand.vmem [shape: f32[2,8,32], index: 0, kind: input, shape index: {}]
  %s1 = inlined_call_operand.vmem [shape: f32[2,8,1], index: 1, kind: input, shape index: {}]
  %s2 = inlined_call_operand.vmem [shape: f32[2,1,8], index: 2, kind: input, shape index: {}]
  %s3 = inlined_call_operand.vmem [shape: f32[1,32], index: 3, kind: input, shape index: {}]
  %s4 = inlined_call_operand.vmem [shape: f32[1,32], index: 4, kind: input, shape index: {}]
  %s5 = inlined_call_operand.vmem [shape: bf16[32,32], index: 5, kind: input, shape index: {}]
  %s6 = inlined_call_operand.vmem [shape: f32[1,32], index: 6, kind: input, shape index: {}]
  %s7 = inlined_call_operand.vmem [shape: bf16[32,32], index: 7, kind: input, shape index: {}]
  %s8 = inlined_call_operand.vmem [shape: f32[1,32], index: 8, kind: input, shape index: {}]
  %s9 = inlined_call_operand.vmem [shape: bf16[32,32], index: 9, kind: input, shape index: {}]
  %s10 = inlined_call_operand.vmem [shape: f32[1,32], index: 10, kind: input, shape index: {}]
  %s11 = inlined_call_operand.vmem [shape: bf16[32,32], index: 11, kind: input, shape index: {}]
  %s12 = inlined_call_operand.vmem [shape: f32[1,32], index: 12, kind: input, shape index: {}]
  %s13 = inlined_call_operand.vmem [shape: f32[1,32], index: 13, kind: input, shape index: {}]
  %s14 = inlined_call_operand.vmem [shape: f32[1,32], index: 14, kind: input, shape index: {}]
  %s15 = inlined_call_operand.vmem [shape: bf16[32,128], index: 15, kind: input, shape index: {}]
  %s16 = inlined_call_operand.vmem [shape: f32[1,128], index: 16, kind: input, shape index: {}]
  %s17 = inlined_call_operand.vmem [shape: bf16[128,32], index: 17, kind: input, shape index: {}]
  %s18 = inlined_call_operand.vmem [shape: f32[1,32], index: 18, kind: input, shape index: {}]
  %s19 = inlined_call_operand.vmem [shape: f32[2,8,32], index: 19, kind: output, shape index: {}]
  %s20 = sld [smem:[#allocation0]]
  $region109: #{molbert_forward.2} parent=0
    _
  %s22 = ssub.s32 1, %s20
  %s23 = scalar_select 0, %s22, %s20
  loop: start=0, step=1, limit=4
  $region2: #{molbert_forward.2} parent=0 // loop_pre_header
    _
  $region3: #{molbert_forward.2} parent=0 // loop_header
    %s25 = sphi 0, %s29
    %p26 = scmp.ge.s32.totalorder %s25, 4
    %s32 = sphi 0, %s44
    %s33 = sphi 0, %s40
    %s34 = sphi 0, %s32
    %s35 = sphi 0, %s33
    %s36 = sphi 0, %s34
    %s37 = sphi 0, %s35
    %s47 = sphi 0, %s49
    %s50 = sphi 0, %s47
    %s51 = sphi 0, %s50
    %s67 = sphi 0, %s51
    %s75 = sphi 0, %s77
    %s78 = sphi 0, %s75
    %s79 = sphi 0, %s78
    %s95 = sphi 0, %s79
    %s101 = sphi 0, %s103
    %s104 = sphi 0, %s101
    %s105 = sphi 0, %s104
    %s121 = sphi 0, %s105
    %s125 = sphi 0, %s125
    %s127 = sphi 0, %s125
    %s128 = sphi 0, %s127
    %s142 = sphi 0, %s128
    %s146 = sphi 0, %s146
    %s148 = sphi 0, %s146
    %s149 = sphi 0, %s148
    %s163 = sphi 0, %s149
    %s167 = sphi 0, %s167
    %s169 = sphi 0, %s167
    %s170 = sphi 0, %s169
    %s184 = sphi 0, %s170
    %s188 = sphi 0, %s188
    %s190 = sphi 0, %s188
    %s191 = sphi 0, %s190
    %s205 = sphi 0, %s191
    %s209 = sphi 0, %s209
    %s211 = sphi 0, %s209
    %s212 = sphi 0, %s211
    %s226 = sphi 0, %s212
    %s230 = sphi 0, %s230
    %s232 = sphi 0, %s230
    %s233 = sphi 0, %s232
    %s247 = sphi 0, %s233
    %s251 = sphi 0, %s251
    %s253 = sphi 0, %s251
    %s254 = sphi 0, %s253
    %s268 = sphi 0, %s254
    %s272 = sphi 0, %s272
    %s274 = sphi 0, %s272
    %s275 = sphi 0, %s274
    %s289 = sphi 0, %s275
    %s293 = sphi 0, %s293
    %s295 = sphi 0, %s293
    %s296 = sphi 0, %s295
    %s310 = sphi 0, %s296
    %s314 = sphi 0, %s314
    %s316 = sphi 0, %s314
    %s317 = sphi 0, %s316
    %s331 = sphi 0, %s317
    %s335 = sphi 0, %s335
    %s337 = sphi 0, %s335
    %s338 = sphi 0, %s337
    %s352 = sphi 0, %s338
    %s356 = sphi 0, %s356
    %s358 = sphi 0, %s356
    %s359 = sphi 0, %s358
    %s373 = sphi 0, %s359
    %s377 = sphi 0, %s377
    %s379 = sphi 0, %s377
    %s380 = sphi 0, %s379
    %s394 = sphi 0, %s380
    %s398 = sphi 0, %s398
    %s400 = sphi 0, %s398
    %s401 = sphi 0, %s400
    %s415 = sphi 0, %s401
    %s419 = sphi 0, %s419
    %s421 = sphi 0, %s419
    %s422 = sphi 0, %s421
    %s436 = sphi 0, %s422
    %s440 = sphi 0, %s440
    %s442 = sphi 0, %s440
    %s443 = sphi 0, %s442
    %s457 = sphi 0, %s443
    %s465 = sphi 0, %s467
    %s468 = sphi 0, %s465
    %s469 = sphi 0, %s468
    %s485 = sphi 0, %s469
  $region4: #{molbert_forward.2} parent=0 // loop_header_branch
    %28 = sbr.rel (%p26) target = $region8
  $region5: #{molbert_forward.2} parent=0 // loop_body
    %s30 = ssub.s32 %s25, 1
    %s31 = ssub.s32 %s25, 2
    %s38 = sadd.s32 1, %s33
    %p39 = scmp.ge.s32.totalorder %s38, 1
    %s40 = scalar_select %p39, 0, %s38
    %s41 = sadd.s32 1, %s32
    %s42 = scalar_select %p39, %s41, %s32
    %p43 = scmp.ge.s32.totalorder %s42, 2
    %s44 = scalar_select %p43, 0, %s42
    %s45 = ssub.s32 %s32, %s44
    %p46 = scmp.eq.s32.totalorder %s45, 0
    %s48 = sadd.s32 %s47, 1
    %s49 = scalar_select %p46, %s47, %s48
    %p52 = pneg %p46
    %p53 = scmp.eq.s32.totalorder %s25, 1
    %p54 = por %p52, %p53
    %p55 = scmp.ne.s32.totalorder %s47, %s50
    %p56 = scmp.eq.s32.totalorder %s25, 0
    %p57 = por %p55, %p56
    %p58 = scmp.ne.s32.totalorder %s47, %s50
    %p59 = scmp.eq.s32.totalorder %s30, 1
    %p60 = por %p58, %p59
    %p61 = scmp.ne.s32.totalorder %s50, %s51
    %p62 = scmp.eq.s32.totalorder %s30, 0
    %p63 = por %p61, %p62
    %p64 = scmp.ne.s32.totalorder %s50, %s51
    %p65 = scmp.eq.s32.totalorder %s31, 1
    %p66 = por %p64, %p65
    %p68 = scmp.ne.s32.totalorder %s51, %s67
    %p69 = scmp.eq.s32.totalorder %s31, 0
    %p70 = por %p68, %p69
    %s71 = ssub.s32 %s32, %s44
    %s72 = ssub.s32 %s33, %s40
    %s73 = sor.u32 %s71, %s72
    %p74 = scmp.eq.s32.totalorder %s73, 0
    %s76 = sadd.s32 %s75, 1
    %s77 = scalar_select %p74, %s75, %s76
    %p80 = pneg %p74
    %p81 = scmp.eq.s32.totalorder %s25, 1
    %p82 = por %p80, %p81
    %p83 = scmp.ne.s32.totalorder %s75, %s78
    %p84 = scmp.eq.s32.totalorder %s25, 0
    %p85 = por %p83, %p84
    %p86 = scmp.ne.s32.totalorder %s75, %s78
    %p87 = scmp.eq.s32.totalorder %s30, 1
    %p88 = por %p86, %p87
    %p89 = scmp.ne.s32.totalorder %s78, %s79
    %p90 = scmp.eq.s32.totalorder %s30, 0
    %p91 = por %p89, %p90
    %p92 = scmp.ne.s32.totalorder %s78, %s79
    %p93 = scmp.eq.s32.totalorder %s31, 1
    %p94 = por %p92, %p93
    %p96 = scmp.ne.s32.totalorder %s79, %s95
    %p97 = scmp.eq.s32.totalorder %s31, 0
    %p98 = por %p96, %p97
    %s99 = ssub.s32 %s32, %s44
    %p100 = scmp.eq.s32.totalorder %s99, 0
    %s102 = sadd.s32 %s101, 1
    %s103 = scalar_select %p100, %s101, %s102
    %p106 = pneg %p100
    %p107 = scmp.eq.s32.totalorder %s25, 1
    %p108 = por %p106, %p107
    %p109 = scmp.ne.s32.totalorder %s101, %s104
    %p110 = scmp.eq.s32.totalorder %s25, 0
    %p111 = por %p109, %p110
    %p112 = scmp.ne.s32.totalorder %s101, %s104
    %p113 = scmp.eq.s32.totalorder %s30, 1
    %p114 = por %p112, %p113
    %p115 = scmp.ne.s32.totalorder %s104, %s105
    %p116 = scmp.eq.s32.totalorder %s30, 0
    %p117 = por %p115, %p116
    %p118 = scmp.ne.s32.totalorder %s104, %s105
    %p119 = scmp.eq.s32.totalorder %s31, 1
    %p120 = por %p118, %p119
    %p122 = scmp.ne.s32.totalorder %s105, %s121
    %p123 = scmp.eq.s32.totalorder %s31, 0
    %p124 = por %p122, %p123
    %s126 = sadd.s32 %s125, 1
    %p129 = scmp.eq.s32.totalorder %s25, 1
    %p130 = scmp.ne.s32.totalorder %s125, %s127
    %p131 = scmp.eq.s32.totalorder %s25, 0
    %p132 = por %p130, %p131
    %p133 = scmp.ne.s32.totalorder %s125, %s127
    %p134 = scmp.eq.s32.totalorder %s30, 1
    %p135 = por %p133, %p134
    %p136 = scmp.ne.s32.totalorder %s127, %s128
    %p137 = scmp.eq.s32.totalorder %s30, 0
    %p138 = por %p136, %p137
    %p139 = scmp.ne.s32.totalorder %s127, %s128
    %p140 = scmp.eq.s32.totalorder %s31, 1
    %p141 = por %p139, %p140
    %p143 = scmp.ne.s32.totalorder %s128, %s142
    %p144 = scmp.eq.s32.totalorder %s31, 0
    %p145 = por %p143, %p144
    %s147 = sadd.s32 %s146, 1
    %p150 = scmp.eq.s32.totalorder %s25, 1
    %p151 = scmp.ne.s32.totalorder %s146, %s148
    %p152 = scmp.eq.s32.totalorder %s25, 0
    %p153 = por %p151, %p152
    %p154 = scmp.ne.s32.totalorder %s146, %s148
    %p155 = scmp.eq.s32.totalorder %s30, 1
    %p156 = por %p154, %p155
    %p157 = scmp.ne.s32.totalorder %s148, %s149
    %p158 = scmp.eq.s32.totalorder %s30, 0
    %p159 = por %p157, %p158
    %p160 = scmp.ne.s32.totalorder %s148, %s149
    %p161 = scmp.eq.s32.totalorder %s31, 1
    %p162 = por %p160, %p161
    %p164 = scmp.ne.s32.totalorder %s149, %s163
    %p165 = scmp.eq.s32.totalorder %s31, 0
    %p166 = por %p164, %p165
    %s168 = sadd.s32 %s167, 1
    %p171 = scmp.eq.s32.totalorder %s25, 1
    %p172 = scmp.ne.s32.totalorder %s167, %s169
    %p173 = scmp.eq.s32.totalorder %s25, 0
    %p174 = por %p172, %p173
    %p175 = scmp.ne.s32.totalorder %s167, %s169
    %p176 = scmp.eq.s32.totalorder %s30, 1
    %p177 = por %p175, %p176
    %p178 = scmp.ne.s32.totalorder %s169, %s170
    %p179 = scmp.eq.s32.totalorder %s30, 0
    %p180 = por %p178, %p179
    %p181 = scmp.ne.s32.totalorder %s169, %s170
    %p182 = scmp.eq.s32.totalorder %s31, 1
    %p183 = por %p181, %p182
    %p185 = scmp.ne.s32.totalorder %s170, %s184
    %p186 = scmp.eq.s32.totalorder %s31, 0
    %p187 = por %p185, %p186
    %s189 = sadd.s32 %s188, 1
    %p192 = scmp.eq.s32.totalorder %s25, 1
    %p193 = scmp.ne.s32.totalorder %s188, %s190
    %p194 = scmp.eq.s32.totalorder %s25, 0
    %p195 = por %p193, %p194
    %p196 = scmp.ne.s32.totalorder %s188, %s190
    %p197 = scmp.eq.s32.totalorder %s30, 1
    %p198 = por %p196, %p197
    %p199 = scmp.ne.s32.totalorder %s190, %s191
    %p200 = scmp.eq.s32.totalorder %s30, 0
    %p201 = por %p199, %p200
    %p202 = scmp.ne.s32.totalorder %s190, %s191
    %p203 = scmp.eq.s32.totalorder %s31, 1
    %p204 = por %p202, %p203
    %p206 = scmp.ne.s32.totalorder %s191, %s205
    %p207 = scmp.eq.s32.totalorder %s31, 0
    %p208 = por %p206, %p207
    %s210 = sadd.s32 %s209, 1
    %p213 = scmp.eq.s32.totalorder %s25, 1
    %p214 = scmp.ne.s32.totalorder %s209, %s211
    %p215 = scmp.eq.s32.totalorder %s25, 0
    %p216 = por %p214, %p215
    %p217 = scmp.ne.s32.totalorder %s209, %s211
    %p218 = scmp.eq.s32.totalorder %s30, 1
    %p219 = por %p217, %p218
    %p220 = scmp.ne.s32.totalorder %s211, %s212
    %p221 = scmp.eq.s32.totalorder %s30, 0
    %p222 = por %p220, %p221
    %p223 = scmp.ne.s32.totalorder %s211, %s212
    %p224 = scmp.eq.s32.totalorder %s31, 1
    %p225 = por %p223, %p224
    %p227 = scmp.ne.s32.totalorder %s212, %s226
    %p228 = scmp.eq.s32.totalorder %s31, 0
    %p229 = por %p227, %p228
    %s231 = sadd.s32 %s230, 1
    %p234 = scmp.eq.s32.totalorder %s25, 1
    %p235 = scmp.ne.s32.totalorder %s230, %s232
    %p236 = scmp.eq.s32.totalorder %s25, 0
    %p237 = por %p235, %p236
    %p238 = scmp.ne.s32.totalorder %s230, %s232
    %p239 = scmp.eq.s32.totalorder %s30, 1
    %p240 = por %p238, %p239
    %p241 = scmp.ne.s32.totalorder %s232, %s233
    %p242 = scmp.eq.s32.totalorder %s30, 0
    %p243 = por %p241, %p242
    %p244 = scmp.ne.s32.totalorder %s232, %s233
    %p245 = scmp.eq.s32.totalorder %s31, 1
    %p246 = por %p244, %p245
    %p248 = scmp.ne.s32.totalorder %s233, %s247
    %p249 = scmp.eq.s32.totalorder %s31, 0
    %p250 = por %p248, %p249
    %s252 = sadd.s32 %s251, 1
    %p255 = scmp.eq.s32.totalorder %s25, 1
    %p256 = scmp.ne.s32.totalorder %s251, %s253
    %p257 = scmp.eq.s32.totalorder %s25, 0
    %p258 = por %p256, %p257
    %p259 = scmp.ne.s32.totalorder %s251, %s253
    %p260 = scmp.eq.s32.totalorder %s30, 1
    %p261 = por %p259, %p260
    %p262 = scmp.ne.s32.totalorder %s253, %s254
    %p263 = scmp.eq.s32.totalorder %s30, 0
    %p264 = por %p262, %p263
    %p265 = scmp.ne.s32.totalorder %s253, %s254
    %p266 = scmp.eq.s32.totalorder %s31, 1
    %p267 = por %p265, %p266
    %p269 = scmp.ne.s32.totalorder %s254, %s268
    %p270 = scmp.eq.s32.totalorder %s31, 0
    %p271 = por %p269, %p270
    %s273 = sadd.s32 %s272, 1
    %p276 = scmp.eq.s32.totalorder %s25, 1
    %p277 = scmp.ne.s32.totalorder %s272, %s274
    %p278 = scmp.eq.s32.totalorder %s25, 0
    %p279 = por %p277, %p278
    %p280 = scmp.ne.s32.totalorder %s272, %s274
    %p281 = scmp.eq.s32.totalorder %s30, 1
    %p282 = por %p280, %p281
    %p283 = scmp.ne.s32.totalorder %s274, %s275
    %p284 = scmp.eq.s32.totalorder %s30, 0
    %p285 = por %p283, %p284
    %p286 = scmp.ne.s32.totalorder %s274, %s275
    %p287 = scmp.eq.s32.totalorder %s31, 1
    %p288 = por %p286, %p287
    %p290 = scmp.ne.s32.totalorder %s275, %s289
    %p291 = scmp.eq.s32.totalorder %s31, 0
    %p292 = por %p290, %p291
    %s294 = sadd.s32 %s293, 1
    %p297 = scmp.eq.s32.totalorder %s25, 1
    %p298 = scmp.ne.s32.totalorder %s293, %s295
    %p299 = scmp.eq.s32.totalorder %s25, 0
    %p300 = por %p298, %p299
    %p301 = scmp.ne.s32.totalorder %s293, %s295
    %p302 = scmp.eq.s32.totalorder %s30, 1
    %p303 = por %p301, %p302
    %p304 = scmp.ne.s32.totalorder %s295, %s296
    %p305 = scmp.eq.s32.totalorder %s30, 0
    %p306 = por %p304, %p305
    %p307 = scmp.ne.s32.totalorder %s295, %s296
    %p308 = scmp.eq.s32.totalorder %s31, 1
    %p309 = por %p307, %p308
    %p311 = scmp.ne.s32.totalorder %s296, %s310
    %p312 = scmp.eq.s32.totalorder %s31, 0
    %p313 = por %p311, %p312
    %s315 = sadd.s32 %s314, 1
    %p318 = scmp.eq.s32.totalorder %s25, 1
    %p319 = scmp.ne.s32.totalorder %s314, %s316
    %p320 = scmp.eq.s32.totalorder %s25, 0
    %p321 = por %p319, %p320
    %p322 = scmp.ne.s32.totalorder %s314, %s316
    %p323 = scmp.eq.s32.totalorder %s30, 1
    %p324 = por %p322, %p323
    %p325 = scmp.ne.s32.totalorder %s316, %s317
    %p326 = scmp.eq.s32.totalorder %s30, 0
    %p327 = por %p325, %p326
    %p328 = scmp.ne.s32.totalorder %s316, %s317
    %p329 = scmp.eq.s32.totalorder %s31, 1
    %p330 = por %p328, %p329
    %p332 = scmp.ne.s32.totalorder %s317, %s331
    %p333 = scmp.eq.s32.totalorder %s31, 0
    %p334 = por %p332, %p333
    %s336 = sadd.s32 %s335, 1
    %p339 = scmp.eq.s32.totalorder %s25, 1
    %p340 = scmp.ne.s32.totalorder %s335, %s337
    %p341 = scmp.eq.s32.totalorder %s25, 0
    %p342 = por %p340, %p341
    %p343 = scmp.ne.s32.totalorder %s335, %s337
    %p344 = scmp.eq.s32.totalorder %s30, 1
    %p345 = por %p343, %p344
    %p346 = scmp.ne.s32.totalorder %s337, %s338
    %p347 = scmp.eq.s32.totalorder %s30, 0
    %p348 = por %p346, %p347
    %p349 = scmp.ne.s32.totalorder %s337, %s338
    %p350 = scmp.eq.s32.totalorder %s31, 1
    %p351 = por %p349, %p350
    %p353 = scmp.ne.s32.totalorder %s338, %s352
    %p354 = scmp.eq.s32.totalorder %s31, 0
    %p355 = por %p353, %p354
    %s357 = sadd.s32 %s356, 1
    %p360 = scmp.eq.s32.totalorder %s25, 1
    %p361 = scmp.ne.s32.totalorder %s356, %s358
    %p362 = scmp.eq.s32.totalorder %s25, 0
    %p363 = por %p361, %p362
    %p364 = scmp.ne.s32.totalorder %s356, %s358
    %p365 = scmp.eq.s32.totalorder %s30, 1
    %p366 = por %p364, %p365
    %p367 = scmp.ne.s32.totalorder %s358, %s359
    %p368 = scmp.eq.s32.totalorder %s30, 0
    %p369 = por %p367, %p368
    %p370 = scmp.ne.s32.totalorder %s358, %s359
    %p371 = scmp.eq.s32.totalorder %s31, 1
    %p372 = por %p370, %p371
    %p374 = scmp.ne.s32.totalorder %s359, %s373
    %p375 = scmp.eq.s32.totalorder %s31, 0
    %p376 = por %p374, %p375
    %s378 = sadd.s32 %s377, 1
    %p381 = scmp.eq.s32.totalorder %s25, 1
    %p382 = scmp.ne.s32.totalorder %s377, %s379
    %p383 = scmp.eq.s32.totalorder %s25, 0
    %p384 = por %p382, %p383
    %p385 = scmp.ne.s32.totalorder %s377, %s379
    %p386 = scmp.eq.s32.totalorder %s30, 1
    %p387 = por %p385, %p386
    %p388 = scmp.ne.s32.totalorder %s379, %s380
    %p389 = scmp.eq.s32.totalorder %s30, 0
    %p390 = por %p388, %p389
    %p391 = scmp.ne.s32.totalorder %s379, %s380
    %p392 = scmp.eq.s32.totalorder %s31, 1
    %p393 = por %p391, %p392
    %p395 = scmp.ne.s32.totalorder %s380, %s394
    %p396 = scmp.eq.s32.totalorder %s31, 0
    %p397 = por %p395, %p396
    %s399 = sadd.s32 %s398, 1
    %p402 = scmp.eq.s32.totalorder %s25, 1
    %p403 = scmp.ne.s32.totalorder %s398, %s400
    %p404 = scmp.eq.s32.totalorder %s25, 0
    %p405 = por %p403, %p404
    %p406 = scmp.ne.s32.totalorder %s398, %s400
    %p407 = scmp.eq.s32.totalorder %s30, 1
    %p408 = por %p406, %p407
    %p409 = scmp.ne.s32.totalorder %s400, %s401
    %p410 = scmp.eq.s32.totalorder %s30, 0
    %p411 = por %p409, %p410
    %p412 = scmp.ne.s32.totalorder %s400, %s401
    %p413 = scmp.eq.s32.totalorder %s31, 1
    %p414 = por %p412, %p413
    %p416 = scmp.ne.s32.totalorder %s401, %s415
    %p417 = scmp.eq.s32.totalorder %s31, 0
    %p418 = por %p416, %p417
    %s420 = sadd.s32 %s419, 1
    %p423 = scmp.eq.s32.totalorder %s25, 1
    %p424 = scmp.ne.s32.totalorder %s419, %s421
    %p425 = scmp.eq.s32.totalorder %s25, 0
    %p426 = por %p424, %p425
    %p427 = scmp.ne.s32.totalorder %s419, %s421
    %p428 = scmp.eq.s32.totalorder %s30, 1
    %p429 = por %p427, %p428
    %p430 = scmp.ne.s32.totalorder %s421, %s422
    %p431 = scmp.eq.s32.totalorder %s30, 0
    %p432 = por %p430, %p431
    %p433 = scmp.ne.s32.totalorder %s421, %s422
    %p434 = scmp.eq.s32.totalorder %s31, 1
    %p435 = por %p433, %p434
    %p437 = scmp.ne.s32.totalorder %s422, %s436
    %p438 = scmp.eq.s32.totalorder %s31, 0
    %p439 = por %p437, %p438
    %s441 = sadd.s32 %s440, 1
    %p444 = scmp.eq.s32.totalorder %s25, 1
    %p445 = scmp.ne.s32.totalorder %s440, %s442
    %p446 = scmp.eq.s32.totalorder %s25, 0
    %p447 = por %p445, %p446
    %p448 = scmp.ne.s32.totalorder %s440, %s442
    %p449 = scmp.eq.s32.totalorder %s30, 1
    %p450 = por %p448, %p449
    %p451 = scmp.ne.s32.totalorder %s442, %s443
    %p452 = scmp.eq.s32.totalorder %s30, 0
    %p453 = por %p451, %p452
    %p454 = scmp.ne.s32.totalorder %s442, %s443
    %p455 = scmp.eq.s32.totalorder %s31, 1
    %p456 = por %p454, %p455
    %p458 = scmp.ne.s32.totalorder %s443, %s457
    %p459 = scmp.eq.s32.totalorder %s31, 0
    %p460 = por %p458, %p459
    %s461 = ssub.s32 %s32, %s44
    %s462 = ssub.s32 %s33, %s40
    %s463 = sor.u32 %s461, %s462
    %p464 = scmp.eq.s32.totalorder %s463, 0
    %s466 = sadd.s32 %s465, 1
    %s467 = scalar_select %p464, %s465, %s466
    %p470 = pneg %p464
    %p471 = scmp.eq.s32.totalorder %s25, 1
    %p472 = por %p470, %p471
    %p473 = scmp.ne.s32.totalorder %s465, %s468
    %p474 = scmp.eq.s32.totalorder %s25, 0
    %p475 = por %p473, %p474
    %p476 = scmp.ne.s32.totalorder %s465, %s468
    %p477 = scmp.eq.s32.totalorder %s30, 1
    %p478 = por %p476, %p477
    %p479 = scmp.ne.s32.totalorder %s468, %s469
    %p480 = scmp.eq.s32.totalorder %s30, 0
    %p481 = por %p479, %p480
    %p482 = scmp.ne.s32.totalorder %s468, %s469
    %p483 = scmp.eq.s32.totalorder %s31, 1
    %p484 = por %p482, %p483
    %p486 = scmp.ne.s32.totalorder %s469, %s485
    %p487 = scmp.eq.s32.totalorder %s31, 0
    %p488 = por %p486, %p487
    %p489 = scmp.le.s32.totalorder 1, %s25
    %p490 = scmp.lt.s32.totalorder %s25, 3
    %p491 = pnand %p489, %p490
    %p492 = pneg %p491
    // Predicated region
    $region9: #{molbert_forward.2} parent=5 // pred_check
      _
    $region10: #{molbert_forward.2} parent=5 // pred_check_branch
      %494 = sbr.rel (%p491) target = $region12
    $region11: #{molbert_forward.2} parent=5 // pred_region
      %s495 = ssub.s32 %s25, 1
      // Predicated region
      $region13: #{molbert_forward.2} parent=11 // pred_check
        %p496 = pneg %p138
      $region14: #{molbert_forward.2} parent=11 // pred_check_branch
        %498 = sbr.rel (%p496) target = $region16
      $region15: #{molbert_forward.2} parent=11 // pred_region
        _
      $region16: #{molbert_forward.2} parent=11 // pred_fallthru
        _
      // Predicated region
      $region17: #{molbert_forward.2} parent=11 // pred_check
        %p499 = pneg %p159
      $region18: #{molbert_forward.2} parent=11 // pred_check_branch
        %501 = sbr.rel (%p499) target = $region20
      $region19: #{molbert_forward.2} parent=11 // pred_region
        _
      $region20: #{molbert_forward.2} parent=11 // pred_fallthru
        _
      // Predicated region
      $region21: #{molbert_forward.2} parent=11 // pred_check
        %p502 = pneg %p180
      $region22: #{molbert_forward.2} parent=11 // pred_check_branch
        %504 = sbr.rel (%p502) target = $region24
      $region23: #{molbert_forward.2} parent=11 // pred_region
        _
      $region24: #{molbert_forward.2} parent=11 // pred_fallthru
        _
      // Predicated region
      $region25: #{molbert_forward.2} parent=11 // pred_check
        %p505 = pneg %p201
      $region26: #{molbert_forward.2} parent=11 // pred_check_branch
        %507 = sbr.rel (%p505) target = $region28
      $region27: #{molbert_forward.2} parent=11 // pred_region
        _
      $region28: #{molbert_forward.2} parent=11 // pred_fallthru
        _
      // Predicated region
      $region29: #{molbert_forward.2} parent=11 // pred_check
        %p508 = pneg %p222
      $region30: #{molbert_forward.2} parent=11 // pred_check_branch
        %510 = sbr.rel (%p508) target = $region32
      $region31: #{molbert_forward.2} parent=11 // pred_region
        _
      $region32: #{molbert_forward.2} parent=11 // pred_fallthru
        _
      // Predicated region
      $region33: #{molbert_forward.2} parent=11 // pred_check
        %p511 = pneg %p243
      $region34: #{molbert_forward.2} parent=11 // pred_check_branch
        %513 = sbr.rel (%p511) target = $region36
      $region35: #{molbert_forward.2} parent=11 // pred_region
        _
      $region36: #{molbert_forward.2} parent=11 // pred_fallthru
        _
      // Predicated region
      $region37: #{molbert_forward.2} parent=11 // pred_check
        %p514 = pneg %p264
      $region38: #{molbert_forward.2} parent=11 // pred_check_branch
        %516 = sbr.rel (%p514) target = $region40
      $region39: #{molbert_forward.2} parent=11 // pred_region
        _
      $region40: #{molbert_forward.2} parent=11 // pred_fallthru
        _
      // Predicated region
      $region41: #{molbert_forward.2} parent=11 // pred_check
        %p517 = pneg %p285
      $region42: #{molbert_forward.2} parent=11 // pred_check_branch
        %519 = sbr.rel (%p517) target = $region44
      $region43: #{molbert_forward.2} parent=11 // pred_region
        _
      $region44: #{molbert_forward.2} parent=11 // pred_fallthru
        _
      // Predicated region
      $region45: #{molbert_forward.2} parent=11 // pred_check
        %p520 = pneg %p306
      $region46: #{molbert_forward.2} parent=11 // pred_check_branch
        %522 = sbr.rel (%p520) target = $region48
      $region47: #{molbert_forward.2} parent=11 // pred_region
        _
      $region48: #{molbert_forward.2} parent=11 // pred_fallthru
        _
      // Predicated region
      $region49: #{molbert_forward.2} parent=11 // pred_check
        %p523 = pneg %p327
      $region50: #{molbert_forward.2} parent=11 // pred_check_branch
        %525 = sbr.rel (%p523) target = $region52
      $region51: #{molbert_forward.2} parent=11 // pred_region
        _
      $region52: #{molbert_forward.2} parent=11 // pred_fallthru
        _
      // Predicated region
      $region53: #{molbert_forward.2} parent=11 // pred_check
        %p526 = pneg %p348
      $region54: #{molbert_forward.2} parent=11 // pred_check_branch
        %528 = sbr.rel (%p526) target = $region56
      $region55: #{molbert_forward.2} parent=11 // pred_region
        _
      $region56: #{molbert_forward.2} parent=11 // pred_fallthru
        _
      // Predicated region
      $region57: #{molbert_forward.2} parent=11 // pred_check
        %p529 = pneg %p369
      $region58: #{molbert_forward.2} parent=11 // pred_check_branch
        %531 = sbr.rel (%p529) target = $region60
      $region59: #{molbert_forward.2} parent=11 // pred_region
        _
      $region60: #{molbert_forward.2} parent=11 // pred_fallthru
        _
      // Predicated region
      $region61: #{molbert_forward.2} parent=11 // pred_check
        %p532 = pneg %p390
      $region62: #{molbert_forward.2} parent=11 // pred_check_branch
        %534 = sbr.rel (%p532) target = $region64
      $region63: #{molbert_forward.2} parent=11 // pred_region
        _
      $region64: #{molbert_forward.2} parent=11 // pred_fallthru
        _
      // Predicated region
      $region65: #{molbert_forward.2} parent=11 // pred_check
        %p535 = pneg %p411
      $region66: #{molbert_forward.2} parent=11 // pred_check_branch
        %537 = sbr.rel (%p535) target = $region68
      $region67: #{molbert_forward.2} parent=11 // pred_region
        _
      $region68: #{molbert_forward.2} parent=11 // pred_fallthru
        _
      // Predicated region
      $region69: #{molbert_forward.2} parent=11 // pred_check
        %p538 = pneg %p432
      $region70: #{molbert_forward.2} parent=11 // pred_check_branch
        %540 = sbr.rel (%p538) target = $region72
      $region71: #{molbert_forward.2} parent=11 // pred_region
        _
      $region72: #{molbert_forward.2} parent=11 // pred_fallthru
        _
      // Predicated region
      $region73: #{molbert_forward.2} parent=11 // pred_check
        %p541 = pneg %p453
      $region74: #{molbert_forward.2} parent=11 // pred_check_branch
        %543 = sbr.rel (%p541) target = $region76
      $region75: #{molbert_forward.2} parent=11 // pred_region
        _
      $region76: #{molbert_forward.2} parent=11 // pred_fallthru
        _
    $region12: #{molbert_forward.2} parent=5 // pred_fallthru
      _
    %p544 = scmp.lt.s32.totalorder %s25, 2
    // Predicated region
    $region77: #{molbert_forward.2} parent=5 // pred_check
      %p545 = pneg %p544
    $region78: #{molbert_forward.2} parent=5 // pred_check_branch
      %547 = sbr.rel (%p545) target = $region80
    $region79: #{molbert_forward.2} parent=5 // pred_region
      // Predicated region
      $region81: #{molbert_forward.2} parent=79 // pred_check
        %p548 = pneg %p57
      $region82: #{molbert_forward.2} parent=79 // pred_check_branch
        %550 = sbr.rel (%p548) target = $region84
      $region83: #{molbert_forward.2} parent=79 // pred_region
        %p551 = scmp.lt.s32.totalorder %s32, 1
        %s552 = scalar_select %p551, %s32, 1
        %s553 = smul.addr %s552, 8
        %s554 = scalar_lea.vmem %s0, %s553
      $region84: #{molbert_forward.2} parent=79 // pred_fallthru
        _
      // Predicated region
      $region85: #{molbert_forward.2} parent=79 // pred_check
        %p555 = pneg %p85
      $region86: #{molbert_forward.2} parent=79 // pred_check_branch
        %557 = sbr.rel (%p555) target = $region88
      $region87: #{molbert_forward.2} parent=79 // pred_region
        %p558 = scmp.lt.s32.totalorder %s32, 1
        %s559 = scalar_select %p558, %s32, 1
        %p560 = scmp.lt.s32.totalorder %s33, 0
        %s561 = scalar_select %p560, %s33, 0
        %s562 = sadd.s32 %s561, %s559
        %s563 = smul.addr %s562, 8
        %s564 = scalar_lea.vmem %s1, %s563
      $region88: #{molbert_forward.2} parent=79 // pred_fallthru
        _
      // Predicated region
      $region89: #{molbert_forward.2} parent=79 // pred_check
        %p565 = pneg %p111
      $region90: #{molbert_forward.2} parent=79 // pred_check_branch
        %567 = sbr.rel (%p565) target = $region92
      $region91: #{molbert_forward.2} parent=79 // pred_region
        %p568 = scmp.lt.s32.totalorder %s32, 1
        %s569 = scalar_select %p568, %s32, 1
        %s570 = scalar_lea.vmem %s2, %s569
      $region92: #{molbert_forward.2} parent=79 // pred_fallthru
        _
    $region80: #{molbert_forward.2} parent=5 // pred_fallthru
      _
    %p571 = scmp.le.s32.totalorder 1, %s25
    %p572 = scmp.lt.s32.totalorder %s25, 3
    %p573 = pnand %p571, %p572
    %p574 = pneg %p573
    // Predicated region
    $region93: #{molbert_forward.2} parent=5 // pred_check
      _
    $region94: #{molbert_forward.2} parent=5 // pred_check_branch
      %576 = sbr.rel (%p573) target = $region96
    $region95: #{molbert_forward.2} parent=5 // pred_region
      %s577 = ssub.s32 %s25, 1
      %p578 = scmp.lt.s32.totalorder %s34, 1
      %s579 = scalar_select %p578, %s34, 1
      %s580 = smul.addr %s579, 8
      %s581 = scalar_lea.vmem %s0, %s580
      %p582 = pneg %p63
      %p583 = pneg %p60
      %p584 = scmp.lt.s32.totalorder %s34, 1
      %s585 = scalar_select %p584, %s34, 1
      %p586 = scmp.lt.s32.totalorder %s35, 0
      %s587 = scalar_select %p586, %s35, 0
      %s588 = sadd.s32 %s587, %s585
      %s589 = smul.addr %s588, 8
      %s590 = scalar_lea.vmem %s1, %s589
      %p591 = pneg %p91
      %p592 = pneg %p88
      %p593 = scmp.lt.s32.totalorder %s34, 1
      %s594 = scalar_select %p593, %s34, 1
      %s595 = scalar_lea.vmem %s2, %s594
      %p596 = pneg %p117
      %p597 = pneg %p114
      %p598 = pneg %p138
      %p599 = pneg %p135
      %p600 = pneg %p159
      %p601 = pneg %p156
      %p602 = pneg %p180
      %p603 = pneg %p177
      %p604 = pneg %p201
      %p605 = pneg %p198
      %p606 = pneg %p222
      %p607 = pneg %p219
      %p608 = pneg %p243
      %p609 = pneg %p240
      %p610 = pneg %p264
      %p611 = pneg %p261
      %p612 = pneg %p285
      %p613 = pneg %p282
      %p614 = pneg %p306
      %p615 = pneg %p303
      %p616 = pneg %p327
      %p617 = pneg %p324
      %p618 = pneg %p348
      %p619 = pneg %p345
      %p620 = pneg %p369
      %p621 = pneg %p366
      %p622 = pneg %p390
      %p623 = pneg %p387
      %p624 = pneg %p411
      %p625 = pneg %p408
      %p626 = pneg %p432
      %p627 = pneg %p429
      %p628 = pneg %p453
      %p629 = pneg %p450
      %p630 = pneg %p481
      %p631 = pneg %p478
      %p632 = scmp.lt.s32.totalorder %s34, 1
      %s633 = scalar_select %p632, %s34, 1
      %p634 = scmp.lt.s32.totalorder %s35, 0
      %s635 = scalar_select %p634, %s35, 0
      %s636 = sadd.s32 %s635, %s633
      %s637 = smul.addr %s636, 8
      %s638 = scalar_lea.vmem %s19, %s637
      %p639 = scmp.lt.s32.totalorder %s34, 1
      %s640 = scalar_select %p639, %s34, 1
      %s641 = smul.addr %s640, 8
      %s642 = scalar_lea.vmem %s0, %s641
      %p643 = scmp.lt.s32.totalorder %s34, 1
      %s644 = scalar_select %p643, %s34, 1
      %p645 = scmp.lt.s32.totalorder %s35, 0
      %s646 = scalar_select %p645, %s35, 0
      %s647 = sadd.s32 %s646, %s644
      %s648 = smul.addr %s647, 8
      %s649 = scalar_lea.vmem %s1, %s648
      %p650 = scmp.lt.s32.totalorder %s34, 1
      %s651 = scalar_select %p650, %s34, 1
      %s652 = scalar_lea.vmem %s2, %s651
      %p653 = scmp.lt.s32.totalorder %s34, 1
      %s654 = scalar_select %p653, %s34, 1
      %p655 = scmp.lt.s32.totalorder %s35, 0
      %s656 = scalar_select %p655, %s35, 0
      %s657 = sadd.s32 %s656, %s654
      %s658 = smul.addr %s657, 8
      %s659 = scalar_lea.vmem %s19, %s658
      %v661 = vld [vmem:[%s642] sm:$0xff]
      %v662 = vld [vmem:[%s3] sm:$0x1]
      %v663 = vld [vmem:[%s4] sm:$0x1]
      %vm664 = vcmask 261120
      %v665 = vsel %vm664, %v661, 0.0
      %666 = vadd.xlane.f32.xlu0 %v665
      %v667 = vpop.xlane.xlu0 %666
      %v668 = vrcp.pop 32.0
      %v669 = vmul.f32 %v667, %v668
      %v670 = vsub.f32 %v661, %v669
      %v671 = vmul.f32 %v670, %v670
      %v672 = vsel %vm664, %v671, 0.0
      %673 = vadd.xlane.f32.xlu0 %v672
      %v674 = vpop.xlane.xlu0 %673
      %v675 = vmul.f32 %v674, 0.032258064
      %v676 = vrsqrt.pop %v675
      %v677 = vmul.f32 %v675, %v676
      %vm678 = vcmp.eq.f32.partialorder %v675, inf
      %v679 = vsel %vm678, %v675, %v677
      %vm680 = vcmp.eq.f32.partialorder %v675, 0.0
      %v681 = vand.u32 %v675, 2147483648
      %v682 = vsel %vm680, %v681, %v679
      %v683 = vadd.f32 %v682, 1e-06
      %v684 = vrcp.pop %v683
      %v686 = vlaneseq
      %v687 = vshrl.u32 %v686, 7
      %v688 = vsub.s32 0, %v687
      %v689 = vrot.slane %v662, %v688
      %v691 = vmul.f32 %v689, %v670
      %v692 = vmul.f32 %v691, %v684
      %v694 = vlaneseq
      %v695 = vshrl.u32 %v694, 7
      %v696 = vsub.s32 0, %v695
      %v697 = vrot.slane %v663, %v696
      %v699 = vadd.f32 %v692, %v697
      %v700 = vpack.c.bf16 %v699, %v699
      %v701 = vld [vmem:[%s7] sm:$0xf]
      %v702 = vld [vmem:[%s7 + $0x4] sm:$0xf]
      %v703 = vld [vmem:[%s7 + $0x8] sm:$0xf]
      %v704 = vld [vmem:[%s7 + $0xc] sm:$0xf]
      %v705 = vld [vmem:[%s8] sm:$0x1]
      %v707 = vlaneseq
      %v708 = vshrl.u32 %v707, 7
      %v709 = vsub.s32 0, %v708
      %v710 = vrot.slane %v705, %v709
      %v716 = vunpack.c.l.b16 %v701
      %v717 = vunpack.c.l.b16 %v702
      %v718 = vunpack.c.l.b16 %v703
      %v719 = vunpack.c.l.b16 %v704
      %v720 = vpack.c.b16 %v717, %v716
      %v721 = vpack.c.b16 %v719, %v718
      %v725 = vsel %vm664, %v700, 0
      %727 = vmatprep.subr.bf16.mxu0 0
      %728 = vmatpush1.bf16.msra.mxu0 %v720
      %729 = vmatprep.subr.bf16.mxu0 0
      %730 = vmatpush1.bf16.msra.mxu0 %v721
      %731 = vmatprep.subr.bf16.mxu0 0
      %732 = vmatpush1.bf16.msra.mxu0 0
      %733 = vmatprep.subr.bf16.mxu0 0
      %734 = vmatpush1.bf16.msra.mxu0 0
      %735 = vmatprep.subr.bf16.mxu0 0
      %736 = vmatpush1.bf16.msra.mxu0 0
      %737 = vmatprep.subr.bf16.mxu0 0
      %738 = vmatpush1.bf16.msra.mxu0 0
      %739 = vmatprep.subr.bf16.mxu0 0
      %740 = vmatpush1.bf16.msra.mxu0 0
      %741 = vmatprep.subr.bf16.mxu0 0
      %742 = vmatpush1.bf16.msra.mxu0 0
      %743 = vmatprep.subr.bf16.mxu0 0
      %744 = vmatpush1.bf16.msra.mxu0 0
      %745 = vmatprep.subr.bf16.mxu0 0
      %746 = vmatpush1.bf16.msra.mxu0 0
      %747 = vmatprep.subr.bf16.mxu0 0
      %748 = vmatpush1.bf16.msra.mxu0 0
      %749 = vmatprep.subr.bf16.mxu0 0
      %750 = vmatpush1.bf16.msra.mxu0 0
      %751 = vmatprep.subr.bf16.mxu0 0
      %752 = vmatpush1.bf16.msra.mxu0 0
      %753 = vmatprep.subr.bf16.mxu0 0
      %754 = vmatpush1.bf16.msra.mxu0 0
      %755 = vmatprep.subr.bf16.mxu0 0
      %756 = vmatpush1.bf16.msra.mxu0 0
      %757 = vmatprep.subr.bf16.mxu0 0
      %758 = vmatpush1.bf16.msra.mxu0 0
      %759 = vmatprep.mubr.bf16.mxu0 0
      %760 = vmatmul.mubr.bf16.gmra.mrb[0].mxu0 %v725
      %v761 = vpop.f32.mrb[0].mxu0
      %v762 = vadd.f32 %v710, %v761
      %v763 = vpop.f32.mrb[0].mxu0
      %v764 = vpop.f32.mrb[0].mxu0
      %v765 = vpop.f32.mrb[0].mxu0
      %766 = vdwg.mxu0
      %v767 = vld [vmem:[%s9] sm:$0xf]
      %v768 = vld [vmem:[%s9 + $0x4] sm:$0xf]
      %v769 = vld [vmem:[%s9 + $0x8] sm:$0xf]
      %v770 = vld [vmem:[%s9 + $0xc] sm:$0xf]
      %v771 = vld [vmem:[%s10] sm:$0x1]
      %v773 = vlaneseq
      %v774 = vshrl.u32 %v773, 7
      %v775 = vsub.s32 0, %v774
      %v776 = vrot.slane %v771, %v775
      %v782 = vunpack.c.l.b16 %v767
      %v783 = vunpack.c.l.b16 %v768
      %v784 = vunpack.c.l.b16 %v769
      %v785 = vunpack.c.l.b16 %v770
      %v786 = vpack.c.b16 %v783, %v782
      %v787 = vpack.c.b16 %v785, %v784
      %790 = vmatprep.subr.bf16.mxu0 0
      %791 = vmatpush1.bf16.msra.mxu0 %v786
      %792 = vmatprep.subr.bf16.mxu0 0
      %793 = vmatpush1.bf16.msra.mxu0 %v787
      %794 = vmatprep.subr.bf16.mxu0 0
      %795 = vmatpush1.bf16.msra.mxu0 0
      %796 = vmatprep.subr.bf16.mxu0 0
      %797 = vmatpush1.bf16.msra.mxu0 0
      %798 = vmatprep.subr.bf16.mxu0 0
      %799 = vmatpush1.bf16.msra.mxu0 0
      %800 = vmatprep.subr.bf16.mxu0 0
      %801 = vmatpush1.bf16.msra.mxu0 0
      %802 = vmatprep.subr.bf16.mxu0 0
      %803 = vmatpush1.bf16.msra.mxu0 0
      %804 = vmatprep.subr.bf16.mxu0 0
      %805 = vmatpush1.bf16.msra.mxu0 0
      %806 = vmatprep.subr.bf16.mxu0 0
      %807 = vmatpush1.bf16.msra.mxu0 0
      %808 = vmatprep.subr.bf16.mxu0 0
      %809 = vmatpush1.bf16.msra.mxu0 0
      %810 = vmatprep.subr.bf16.mxu0 0
      %811 = vmatpush1.bf16.msra.mxu0 0
      %812 = vmatprep.subr.bf16.mxu0 0
      %813 = vmatpush1.bf16.msra.mxu0 0
      %814 = vmatprep.subr.bf16.mxu0 0
      %815 = vmatpush1.bf16.msra.mxu0 0
      %816 = vmatprep.subr.bf16.mxu0 0
      %817 = vmatpush1.bf16.msra.mxu0 0
      %818 = vmatprep.subr.bf16.mxu0 0
      %819 = vmatpush1.bf16.msra.mxu0 0
      %820 = vmatprep.subr.bf16.mxu0 0
      %821 = vmatpush1.bf16.msra.mxu0 0
      %822 = vmatprep.mubr.bf16.mxu0 0
      %823 = vmatmul.mubr.bf16.gmra.mrb[0].mxu0 %v725
      %v824 = vpop.f32.mrb[0].mxu0
      %v825 = vadd.f32 %v776, %v824
      %v826 = vpop.f32.mrb[0].mxu0
      %v827 = vpop.f32.mrb[0].mxu0
      %v828 = vpop.f32.mrb[0].mxu0
      %829 = vdwg.mxu0
      %v830 = vld [vmem:[%s5] sm:$0xf]
      %v831 = vld [vmem:[%s5 + $0x4] sm:$0xf]
      %v832 = vld [vmem:[%s5 + $0x8] sm:$0xf]
      %v833 = vld [vmem:[%s5 + $0xc] sm:$0xf]
      %v834 = vld [vmem:[%s6] sm:$0x1]
      %v836 = vlaneseq
      %v837 = vshrl.u32 %v836, 7
      %v838 = vsub.s32 0, %v837
      %v839 = vrot.slane %v834, %v838
      %v845 = vunpack.c.l.b16 %v830
      %v846 = vunpack.c.l.b16 %v831
      %v847 = vunpack.c.l.b16 %v832
      %v848 = vunpack.c.l.b16 %v833
      %v849 = vpack.c.b16 %v846, %v845
      %v850 = vpack.c.b16 %v848, %v847
      %853 = vmatprep.subr.bf16.mxu0 0
      %854 = vmatpush1.bf16.msra.mxu0 %v849
      %855 = vmatprep.subr.bf16.mxu0 0
      %856 = vmatpush1.bf16.msra.mxu0 %v850
      %857 = vmatprep.subr.bf16.mxu0 0
      %858 = vmatpush1.bf16.msra.mxu0 0
      %859 = vmatprep.subr.bf16.mxu0 0
      %860 = vmatpush1.bf16.msra.mxu0 0
      %861 = vmatprep.subr.bf16.mxu0 0
      %862 = vmatpush1.bf16.msra.mxu0 0
      %863 = vmatprep.subr.bf16.mxu0 0
      %864 = vmatpush1.bf16.msra.mxu0 0
      %865 = vmatprep.subr.bf16.mxu0 0
      %866 = vmatpush1.bf16.msra.mxu0 0
      %867 = vmatprep.subr.bf16.mxu0 0
      %868 = vmatpush1.bf16.msra.mxu0 0
      %869 = vmatprep.subr.bf16.mxu0 0
      %870 = vmatpush1.bf16.msra.mxu0 0
      %871 = vmatprep.subr.bf16.mxu0 0
      %872 = vmatpush1.bf16.msra.mxu0 0
      %873 = vmatprep.subr.bf16.mxu0 0
      %874 = vmatpush1.bf16.msra.mxu0 0
      %875 = vmatprep.subr.bf16.mxu0 0
      %876 = vmatpush1.bf16.msra.mxu0 0
      %877 = vmatprep.subr.bf16.mxu0 0
      %878 = vmatpush1.bf16.msra.mxu0 0
      %879 = vmatprep.subr.bf16.mxu0 0
      %880 = vmatpush1.bf16.msra.mxu0 0
      %881 = vmatprep.subr.bf16.mxu0 0
      %882 = vmatpush1.bf16.msra.mxu0 0
      %883 = vmatprep.subr.bf16.mxu0 0
      %884 = vmatpush1.bf16.msra.mxu0 0
      %885 = vmatprep.mubr.bf16.mxu0 0
      %886 = vmatmul.mubr.bf16.gmra.mrb[0].mxu0 %v725
      %v887 = vpop.f32.mrb[0].mxu0
      %v888 = vadd.f32 %v839, %v887
      %v889 = vpop.f32.mrb[0].mxu0
      %v890 = vpop.f32.mrb[0].mxu0
      %v891 = vpop.f32.mrb[0].mxu0
      %892 = vdwg.mxu0
      %v893 = vmul.f32 %v888, 0.35355338
      %895 = vrot.lane.b32.xlu0 %v893, 120
      %v896 = vpop.permute.xlu0 %895
      %898 = vrot.lane.b32.xlu0 %v893, 112
      %v899 = vpop.permute.xlu0 %898
      %901 = vrot.lane.b32.xlu0 %v893, 104
      %v902 = vpop.permute.xlu0 %901
      %v904 = vcombine.low %v893, %v899
      %v905 = vcombine.high %v893, %v899
      %v907 = vunpack.c.l.s4 1983009808
      %v908 = vunpack.c.0.s8 %v907
      %v909 = vlaneseq
      %v910 = vshrl.u32 %v909, 7
      %v911 = vsub.s32 %v908, %v910
      %v912 = vrot.slane %v904, %v911
      %v914 = vunpack.c.l.s4 1983009808
      %v915 = vunpack.c.0.s8 %v914
      %v916 = vlaneseq
      %v917 = vshrl.u32 %v916, 7
      %v918 = vsub.s32 %v915, %v917
      %v919 = vrot.slane %v905, %v918
      %v920 = vcombine.low %v896, %v902
      %v921 = vcombine.high %v896, %v902
      %v923 = vunpack.c.l.s4 1983009808
      %v924 = vunpack.c.0.s8 %v923
      %v925 = vlaneseq
      %v926 = vshrl.u32 %v925, 7
      %v927 = vsub.s32 %v924, %v926
      %v928 = vrot.slane %v920, %v927
      %v930 = vunpack.c.l.s4 1983009808
      %v931 = vunpack.c.0.s8 %v930
      %v932 = vlaneseq
      %v933 = vshrl.u32 %v932, 7
      %v934 = vsub.s32 %v931, %v933
      %v935 = vrot.slane %v921, %v934
      %v936 = vcombine.low %v912, %v928
      %v937 = vcombine.high %v912, %v928
      %v939 = vunpack.c.l.s4 1934713408
      %v940 = vunpack.c.0.s8 %v939
      %v941 = vlaneseq
      %v942 = vshrl.u32 %v941, 7
      %v943 = vsub.s32 %v940, %v942
      %v944 = vrot.slane %v936, %v943
      %v946 = vunpack.c.l.s4 1934713408
      %v947 = vunpack.c.0.s8 %v946
      %v948 = vlaneseq
      %v949 = vshrl.u32 %v948, 7
      %v950 = vsub.s32 %v947, %v949
      %v951 = vrot.slane %v937, %v950
      %v952 = vcombine.low %v919, %v935
      %v953 = vcombine.high %v919, %v935
      %v955 = vunpack.c.l.s4 1934713408
      %v956 = vunpack.c.0.s8 %v955
      %v957 = vlaneseq
      %v958 = vshrl.u32 %v957, 7
      %v959 = vsub.s32 %v956, %v958
      %v960 = vrot.slane %v952, %v959
      %v962 = vunpack.c.l.s4 1934713408
      %v963 = vunpack.c.0.s8 %v962
      %v964 = vlaneseq
      %v965 = vshrl.u32 %v964, 7
      %v966 = vsub.s32 %v963, %v965
      %v967 = vrot.slane %v953, %v966
      %v968 = vcombine.high %v944, 0.0
      %v969 = vcombine.high %v951, 0.0
      %v970 = vcombine.high %v960, 0.0
      %v971 = vcombine.high %v967, 0.0
      %v972 = vcombine.low %v944, %v951
      %v974 = vunpack.c.l.s4 1983009808
      %v975 = vunpack.c.0.s8 %v974
      %v976 = vlaneseq
      %v977 = vshrl.u32 %v976, 7
      %v978 = vsub.s32 %v975, %v977
      %v979 = vrot.slane %v972, %v978
      %v980 = vcombine.low %v968, %v969
      %v982 = vunpack.c.l.s4 1983009808
      %v983 = vunpack.c.0.s8 %v982
      %v984 = vlaneseq
      %v985 = vshrl.u32 %v984, 7
      %v986 = vsub.s32 %v983, %v985
      %v987 = vrot.slane %v980, %v986
      %v988 = vcombine.low %v960, %v967
      %v990 = vunpack.c.l.s4 1983009808
      %v991 = vunpack.c.0.s8 %v990
      %v992 = vlaneseq
      %v993 = vshrl.u32 %v992, 7
      %v994 = vsub.s32 %v991, %v993
      %v995 = vrot.slane %v988, %v994
      %v996 = vcombine.low %v970, %v971
      %v998 = vunpack.c.l.s4 1983009808
      %v999 = vunpack.c.0.s8 %v998
      %v1000 = vlaneseq
      %v1001 = vshrl.u32 %v1000, 7
      %v1002 = vsub.s32 %v999, %v1001
      %v1003 = vrot.slane %v996, %v1002
      %v1004 = vcombine.low %v979, %v987
      %v1005 = vcombine.high %v979, %v987
      %v1007 = vunpack.c.l.s4 1934713408
      %v1008 = vunpack.c.0.s8 %v1007
      %v1009 = vlaneseq
      %v1010 = vshrl.u32 %v1009, 7
      %v1011 = vsub.s32 %v1008, %v1010
      %v1012 = vrot.slane %v1004, %v1011
      %v1014 = vunpack.c.l.s4 1934713408
      %v1015 = vunpack.c.0.s8 %v1014
      %v1016 = vlaneseq
      %v1017 = vshrl.u32 %v1016, 7
      %v1018 = vsub.s32 %v1015, %v1017
      %v1019 = vrot.slane %v1005, %v1018
      %v1020 = vcombine.low %v995, %v1003
      %v1021 = vcombine.high %v995, %v1003
      %v1023 = vunpack.c.l.s4 1934713408
      %v1024 = vunpack.c.0.s8 %v1023
      %v1025 = vlaneseq
      %v1026 = vshrl.u32 %v1025, 7
      %v1027 = vsub.s32 %v1024, %v1026
      %v1028 = vrot.slane %v1020, %v1027
      %v1030 = vunpack.c.l.s4 1934713408
      %v1031 = vunpack.c.0.s8 %v1030
      %v1032 = vlaneseq
      %v1033 = vshrl.u32 %v1032, 7
      %v1034 = vsub.s32 %v1031, %v1033
      %v1035 = vrot.slane %v1021, %v1034
      %v1036 = vcombine.low %v1012, %v1028
      %v1037 = vcombine.high %v1012, %v1028
      %v1038 = vcombine.low %v1019, %v1035
      %v1039 = vcombine.high %v1019, %v1035
      %v1040 = vpack.c.bf16 %v1036, %v1036
      %v1041 = vpack.c.bf16 %v1037, %v1037
      %v1042 = vpack.c.bf16 %v1038, %v1038
      %v1043 = vpack.c.bf16 %v1039, %v1039
      %1045 = vrot.lane.b32.xlu0 %v762, 120
      %v1046 = vpop.permute.xlu0 %1045
      %1048 = vrot.lane.b32.xlu0 %v762, 112
      %v1049 = vpop.permute.xlu0 %1048
      %1051 = vrot.lane.b32.xlu0 %v762, 104
      %v1052 = vpop.permute.xlu0 %1051
      %v1054 = vcombine.low %v762, %v1049
      %v1055 = vcombine.high %v762, %v1049
      %v1057 = vunpack.c.l.s4 1983009808
      %v1058 = vunpack.c.0.s8 %v1057
      %v1059 = vlaneseq
      %v1060 = vshrl.u32 %v1059, 7
      %v1061 = vsub.s32 %v1058, %v1060
      %v1062 = vrot.slane %v1054, %v1061
      %v1064 = vunpack.c.l.s4 1983009808
      %v1065 = vunpack.c.0.s8 %v1064
      %v1066 = vlaneseq
      %v1067 = vshrl.u32 %v1066, 7
      %v1068 = vsub.s32 %v1065, %v1067
      %v1069 = vrot.slane %v1055, %v1068
      %v1070 = vcombine.low %v1046, %v1052
      %v1071 = vcombine.high %v1046, %v1052
      %v1073 = vunpack.c.l.s4 1983009808
      %v1074 = vunpack.c.0.s8 %v1073
      %v1075 = vlaneseq
      %v1076 = vshrl.u32 %v1075, 7
      %v1077 = vsub.s32 %v1074, %v1076
      %v1078 = vrot.slane %v1070, %v1077
      %v1080 = vunpack.c.l.s4 1983009808
      %v1081 = vunpack.c.0.s8 %v1080
      %v1082 = vlaneseq
      %v1083 = vshrl.u32 %v1082, 7
      %v1084 = vsub.s32 %v1081, %v1083
      %v1085 = vrot.slane %v1071, %v1084
      %v1086 = vcombine.low %v1062, %v1078
      %v1087 = vcombine.high %v1062, %v1078
      %v1089 = vunpack.c.l.s4 1934713408
      %v1090 = vunpack.c.0.s8 %v1089
      %v1091 = vlaneseq
      %v1092 = vshrl.u32 %v1091, 7
      %v1093 = vsub.s32 %v1090, %v1092
      %v1094 = vrot.slane %v1086, %v1093
      %v1096 = vunpack.c.l.s4 1934713408
      %v1097 = vunpack.c.0.s8 %v1096
      %v1098 = vlaneseq
      %v1099 = vshrl.u32 %v1098, 7
      %v1100 = vsub.s32 %v1097, %v1099
      %v1101 = vrot.slane %v1087, %v1100
      %v1102 = vcombine.low %v1069, %v1085
      %v1103 = vcombine.high %v1069, %v1085
      %v1105 = vunpack.c.l.s4 1934713408
      %v1106 = vunpack.c.0.s8 %v1105
      %v1107 = vlaneseq
      %v1108 = vshrl.u32 %v1107, 7
      %v1109 = vsub.s32 %v1106, %v1108
      %v1110 = vrot.slane %v1102, %v1109
      %v1112 = vunpack.c.l.s4 1934713408
      %v1113 = vunpack.c.0.s8 %v1112
      %v1114 = vlaneseq
      %v1115 = vshrl.u32 %v1114, 7
      %v1116 = vsub.s32 %v1113, %v1115
      %v1117 = vrot.slane %v1103, %v1116
      %v1118 = vcombine.high %v1094, 0.0
      %v1119 = vcombine.high %v1101, 0.0
      %v1120 = vcombine.high %v1110, 0.0
      %v1121 = vcombine.high %v1117, 0.0
      %v1122 = vcombine.low %v1094, %v1101
      %v1124 = vunpack.c.l.s4 1983009808
      %v1125 = vunpack.c.0.s8 %v1124
      %v1126 = vlaneseq
      %v1127 = vshrl.u32 %v1126, 7
      %v1128 = vsub.s32 %v1125, %v1127
      %v1129 = vrot.slane %v1122, %v1128
      %v1130 = vcombine.low %v1118, %v1119
      %v1132 = vunpack.c.l.s4 1983009808
      %v1133 = vunpack.c.0.s8 %v1132
      %v1134 = vlaneseq
      %v1135 = vshrl.u32 %v1134, 7
      %v1136 = vsub.s32 %v1133, %v1135
      %v1137 = vrot.slane %v1130, %v1136
      %v1138 = vcombine.low %v1110, %v1117
      %v1140 = vunpack.c.l.s4 1983009808
      %v1141 = vunpack.c.0.s8 %v1140
      %v1142 = vlaneseq
      %v1143 = vshrl.u32 %v1142, 7
      %v1144 = vsub.s32 %v1141, %v1143
      %v1145 = vrot.slane %v1138, %v1144
      %v1146 = vcombine.low %v1120, %v1121
      %v1148 = vunpack.c.l.s4 1983009808
      %v1149 = vunpack.c.0.s8 %v1148
      %v1150 = vlaneseq
      %v1151 = vshrl.u32 %v1150, 7
      %v1152 = vsub.s32 %v1149, %v1151
      %v1153 = vrot.slane %v1146, %v1152
      %v1154 = vcombine.low %v1129, %v1137
      %v1155 = vcombine.high %v1129, %v1137
      %v1157 = vunpack.c.l.s4 1934713408
      %v1158 = vunpack.c.0.s8 %v1157
      %v1159 = vlaneseq
      %v1160 = vshrl.u32 %v1159, 7
      %v1161 = vsub.s32 %v1158, %v1160
      %v1162 = vrot.slane %v1154, %v1161
      %v1164 = vunpack.c.l.s4 1934713408
      %v1165 = vunpack.c.0.s8 %v1164
      %v1166 = vlaneseq
      %v1167 = vshrl.u32 %v1166, 7
      %v1168 = vsub.s32 %v1165, %v1167
      %v1169 = vrot.slane %v1155, %v1168
      %v1170 = vcombine.low %v1145, %v1153
      %v1171 = vcombine.high %v1145, %v1153
      %v1173 = vunpack.c.l.s4 1934713408
      %v1174 = vunpack.c.0.s8 %v1173
      %v1175 = vlaneseq
      %v1176 = vshrl.u32 %v1175, 7
      %v1177 = vsub.s32 %v1174, %v1176
      %v1178 = vrot.slane %v1170, %v1177
      %v1180 = vunpack.c.l.s4 1934713408
      %v1181 = vunpack.c.0.s8 %v1180
      %v1182 = vlaneseq
      %v1183 = vshrl.u32 %v1182, 7
      %v1184 = vsub.s32 %v1181, %v1183
      %v1185 = vrot.slane %v1171, %v1184
      %v1186 = vcombine.low %v1162, %v1178
      %v1187 = vcombine.high %v1162, %v1178
      %v1188 = vcombine.low %v1169, %v1185
      %v1189 = vcombine.high %v1169, %v1185
      %v1190 = vpack.c.bf16 %v1186, %v1186
      %v1191 = vpack.c.bf16 %v1187, %v1187
      %v1192 = vpack.c.bf16 %v1188, %v1188
      %v1193 = vpack.c.bf16 %v1189, %v1189
      %1195 = vrot.lane.b32.xlu0 %v825, 120
      %v1196 = vpop.permute.xlu0 %1195
      %1198 = vrot.lane.b32.xlu0 %v825, 112
      %v1199 = vpop.permute.xlu0 %1198
      %1201 = vrot.lane.b32.xlu0 %v825, 104
      %v1202 = vpop.permute.xlu0 %1201
      %v1204 = vcombine.low %v825, %v1199
      %v1205 = vcombine.high %v825, %v1199
      %v1207 = vunpack.c.l.s4 1983009808
      %v1208 = vunpack.c.0.s8 %v1207
      %v1209 = vlaneseq
      %v1210 = vshrl.u32 %v1209, 7
      %v1211 = vsub.s32 %v1208, %v1210
      %v1212 = vrot.slane %v1204, %v1211
      %v1214 = vunpack.c.l.s4 1983009808
      %v1215 = vunpack.c.0.s8 %v1214
      %v1216 = vlaneseq
      %v1217 = vshrl.u32 %v1216, 7
      %v1218 = vsub.s32 %v1215, %v1217
      %v1219 = vrot.slane %v1205, %v1218
      %v1220 = vcombine.low %v1196, %v1202
      %v1221 = vcombine.high %v1196, %v1202
      %v1223 = vunpack.c.l.s4 1983009808
      %v1224 = vunpack.c.0.s8 %v1223
      %v1225 = vlaneseq
      %v1226 = vshrl.u32 %v1225, 7
      %v1227 = vsub.s32 %v1224, %v1226
      %v1228 = vrot.slane %v1220, %v1227
      %v1230 = vunpack.c.l.s4 1983009808
      %v1231 = vunpack.c.0.s8 %v1230
      %v1232 = vlaneseq
      %v1233 = vshrl.u32 %v1232, 7
      %v1234 = vsub.s32 %v1231, %v1233
      %v1235 = vrot.slane %v1221, %v1234
      %v1236 = vcombine.low %v1212, %v1228
      %v1237 = vcombine.high %v1212, %v1228
      %v1239 = vunpack.c.l.s4 1934713408
      %v1240 = vunpack.c.0.s8 %v1239
      %v1241 = vlaneseq
      %v1242 = vshrl.u32 %v1241, 7
      %v1243 = vsub.s32 %v1240, %v1242
      %v1244 = vrot.slane %v1236, %v1243
      %v1246 = vunpack.c.l.s4 1934713408
      %v1247 = vunpack.c.0.s8 %v1246
      %v1248 = vlaneseq
      %v1249 = vshrl.u32 %v1248, 7
      %v1250 = vsub.s32 %v1247, %v1249
      %v1251 = vrot.slane %v1237, %v1250
      %v1252 = vcombine.low %v1219, %v1235
      %v1253 = vcombine.high %v1219, %v1235
      %v1255 = vunpack.c.l.s4 1934713408
      %v1256 = vunpack.c.0.s8 %v1255
      %v1257 = vlaneseq
      %v1258 = vshrl.u32 %v1257, 7
      %v1259 = vsub.s32 %v1256, %v1258
      %v1260 = vrot.slane %v1252, %v1259
      %v1262 = vunpack.c.l.s4 1934713408
      %v1263 = vunpack.c.0.s8 %v1262
      %v1264 = vlaneseq
      %v1265 = vshrl.u32 %v1264, 7
      %v1266 = vsub.s32 %v1263, %v1265
      %v1267 = vrot.slane %v1253, %v1266
      %v1268 = vcombine.high %v1244, 0.0
      %v1269 = vcombine.high %v1251, 0.0
      %v1270 = vcombine.high %v1260, 0.0
      %v1271 = vcombine.high %v1267, 0.0
      %v1272 = vcombine.low %v1244, %v1251
      %v1274 = vunpack.c.l.s4 1983009808
      %v1275 = vunpack.c.0.s8 %v1274
      %v1276 = vlaneseq
      %v1277 = vshrl.u32 %v1276, 7
      %v1278 = vsub.s32 %v1275, %v1277
      %v1279 = vrot.slane %v1272, %v1278
      %v1280 = vcombine.low %v1268, %v1269
      %v1282 = vunpack.c.l.s4 1983009808
      %v1283 = vunpack.c.0.s8 %v1282
      %v1284 = vlaneseq
      %v1285 = vshrl.u32 %v1284, 7
      %v1286 = vsub.s32 %v1283, %v1285
      %v1287 = vrot.slane %v1280, %v1286
      %v1288 = vcombine.low %v1260, %v1267
      %v1290 = vunpack.c.l.s4 1983009808
      %v1291 = vunpack.c.0.s8 %v1290
      %v1292 = vlaneseq
      %v1293 = vshrl.u32 %v1292, 7
      %v1294 = vsub.s32 %v1291, %v1293
      %v1295 = vrot.slane %v1288, %v1294
      %v1296 = vcombine.low %v1270, %v1271
      %v1298 = vunpack.c.l.s4 1983009808
      %v1299 = vunpack.c.0.s8 %v1298
      %v1300 = vlaneseq
      %v1301 = vshrl.u32 %v1300, 7
      %v1302 = vsub.s32 %v1299, %v1301
      %v1303 = vrot.slane %v1296, %v1302
      %v1304 = vcombine.low %v1279, %v1287
      %v1305 = vcombine.high %v1279, %v1287
      %v1307 = vunpack.c.l.s4 1934713408
      %v1308 = vunpack.c.0.s8 %v1307
      %v1309 = vlaneseq
      %v1310 = vshrl.u32 %v1309, 7
      %v1311 = vsub.s32 %v1308, %v1310
      %v1312 = vrot.slane %v1304, %v1311
      %v1314 = vunpack.c.l.s4 1934713408
      %v1315 = vunpack.c.0.s8 %v1314
      %v1316 = vlaneseq
      %v1317 = vshrl.u32 %v1316, 7
      %v1318 = vsub.s32 %v1315, %v1317
      %v1319 = vrot.slane %v1305, %v1318
      %v1320 = vcombine.low %v1295, %v1303
      %v1321 = vcombine.high %v1295, %v1303
      %v1323 = vunpack.c.l.s4 1934713408
      %v1324 = vunpack.c.0.s8 %v1323
      %v1325 = vlaneseq
      %v1326 = vshrl.u32 %v1325, 7
      %v1327 = vsub.s32 %v1324, %v1326
      %v1328 = vrot.slane %v1320, %v1327
      %v1330 = vunpack.c.l.s4 1934713408
      %v1331 = vunpack.c.0.s8 %v1330
      %v1332 = vlaneseq
      %v1333 = vshrl.u32 %v1332, 7
      %v1334 = vsub.s32 %v1331, %v1333
      %v1335 = vrot.slane %v1321, %v1334
      %v1336 = vcombine.low %v1312, %v1328
      %v1337 = vcombine.high %v1312, %v1328
      %v1338 = vcombine.low %v1319, %v1335
      %v1339 = vcombine.high %v1319, %v1335
      %v1340 = vpack.c.bf16 %v1336, %v1336
      %v1341 = vpack.c.bf16 %v1337, %v1337
      %v1342 = vpack.c.bf16 %v1338, %v1338
      %v1343 = vpack.c.bf16 %v1339, %v1339
      %v1344 = vld [vmem:[%s649] sm:$0xff]
      %v1345 = vld [vmem:[%s652] sm:$0x1]
      %1347 = vset.pattern.permute.xlu0 0
      %1348 = vperm.xlu0 %1347, %v1344
      %v1349 = vpop.permute.xlu0 %1348
      %v1352 = vlaneseq
      %v1353 = vshrl.u32 %v1352, 7
      %v1354 = vsub.s32 0, %v1353
      %v1355 = vrot.slane %v1345, %v1354
      %v1357 = vmul.f32 %v1349, %v1355
      %v1358 = vsub.f32 %v1357, 1.0
      %v1359 = vmul.f32 %v1358, 1e+09
      %vm1360 = vcmask 64512
      %v1362 = vsel %vm1360, %v1040, 0
      %v1365 = vsel %vm1360, %v1190, 0
      %1367 = vmatprep.subr.bf16.mxu0 0
      %1368 = vmatpush1.bf16.xpose.msra.mxu0 %v1365
      %1369 = vmatprep.subr.bf16.mxu0 0
      %1370 = vmatpush1.bf16.xpose.msra.mxu0 0
      %1371 = vmatprep.subr.bf16.mxu0 0
      %1372 = vmatpush1.bf16.xpose.msra.mxu0 0
      %1373 = vmatprep.subr.bf16.mxu0 0
      %1374 = vmatpush1.bf16.xpose.msra.mxu0 0
      %1375 = vmatprep.subr.bf16.mxu0 0
      %1376 = vmatpush1.bf16.xpose.msra.mxu0 0
      %1377 = vmatprep.subr.bf16.mxu0 0
      %1378 = vmatpush1.bf16.xpose.msra.mxu0 0
      %1379 = vmatprep.subr.bf16.mxu0 0
      %1380 = vmatpush1.bf16.xpose.msra.mxu0 0
      %1381 = vmatprep.subr.bf16.mxu0 0
      %1382 = vmatpush1.bf16.xpose.msra.mxu0 0
      %1383 = vmatprep.subr.bf16.mxu0 0
      %1384 = vmatpush1.bf16.xpose.msra.mxu0 0
      %1385 = vmatprep.subr.bf16.mxu0 0
      %1386 = vmatpush1.bf16.xpose.msra.mxu0 0
      %1387 = vmatprep.subr.bf16.mxu0 0
      %1388 = vmatpush1.bf16.xpose.msra.mxu0 0
      %1389 = vmatprep.subr.bf16.mxu0 0
      %1390 = vmatpush1.bf16.xpose.msra.mxu0 0
      %1391 = vmatprep.subr.bf16.mxu0 0
      %1392 = vmatpush1.bf16.xpose.msra.mxu0 0
      %1393 = vmatprep.subr.bf16.mxu0 0
      %1394 = vmatpush1.bf16.xpose.msra.mxu0 0
      %1395 = vmatprep.subr.bf16.mxu0 0
      %1396 = vmatpush1.bf16.xpose.msra.mxu0 0
      %1397 = vmatprep.subr.bf16.mxu0 0
      %1398 = vmatpush1.bf16.xpose.msra.mxu0 0
      %1399 = vmatprep.mubr.bf16.mxu0 0
      %1400 = vmatmul.mubr.bf16.gmra.mrb[0].mxu0 %v1362
      %v1401 = vpop.f32.mrb[0].mxu0
      %v1402 = vadd.f32 %v1359, %v1401
      %v1403 = vpop.f32.mrb[0].mxu0
      %v1404 = vpop.f32.mrb[0].mxu0
      %v1405 = vpop.f32.mrb[0].mxu0
      %1406 = vdwg.mxu0
      %v1408 = vsel %vm1360, %v1041, 0
      %v1411 = vsel %vm1360, %v1191, 0
      %1413 = vmatprep.subr.bf16.mxu0 0
      %1414 = vmatpush1.bf16.xpose.msra.mxu0 %v1411
      %1415 = vmatprep.subr.bf16.mxu0 0
      %1416 = vmatpush1.bf16.xpose.msra.mxu0 0
      %1417 = vmatprep.subr.bf16.mxu0 0
      %1418 = vmatpush1.bf16.xpose.msra.mxu0 0
      %1419 = vmatprep.subr.bf16.mxu0 0
      %1420 = vmatpush1.bf16.xpose.msra.mxu0 0
      %1421 = vmatprep.subr.bf16.mxu0 0
      %1422 = vmatpush1.bf16.xpose.msra.mxu0 0
      %1423 = vmatprep.subr.bf16.mxu0 0
      %1424 = vmatpush1.bf16.xpose.msra.mxu0 0
      %1425 = vmatprep.subr.bf16.mxu0 0
      %1426 = vmatpush1.bf16.xpose.msra.mxu0 0
      %1427 = vmatprep.subr.bf16.mxu0 0
      %1428 = vmatpush1.bf16.xpose.msra.mxu0 0
      %1429 = vmatprep.subr.bf16.mxu0 0
      %1430 = vmatpush1.bf16.xpose.msra.mxu0 0
      %1431 = vmatprep.subr.bf16.mxu0 0
      %1432 = vmatpush1.bf16.xpose.msra.mxu0 0
      %1433 = vmatprep.subr.bf16.mxu0 0
      %1434 = vmatpush1.bf16.xpose.msra.mxu0 0
      %1435 = vmatprep.subr.bf16.mxu0 0
      %1436 = vmatpush1.bf16.xpose.msra.mxu0 0
      %1437 = vmatprep.subr.bf16.mxu0 0
      %1438 = vmatpush1.bf16.xpose.msra.mxu0 0
      %1439 = vmatprep.subr.bf16.mxu0 0
      %1440 = vmatpush1.bf16.xpose.msra.mxu0 0
      %1441 = vmatprep.subr.bf16.mxu0 0
      %1442 = vmatpush1.bf16.xpose.msra.mxu0 0
      %1443 = vmatprep.subr.bf16.mxu0 0
      %1444 = vmatpush1.bf16.xpose.msra.mxu0 0
      %1445 = vmatprep.mubr.bf16.mxu0 0
      %1446 = vmatmul.mubr.bf16.gmra.mrb[0].mxu0 %v1408
      %v1447 = vpop.f32.mrb[0].mxu0
      %v1448 = vadd.f32 %v1359, %v1447
      %v1449 = vpop.f32.mrb[0].mxu0
      %v1450 = vpop.f32.mrb[0].mxu0
      %v1451 = vpop.f32.mrb[0].mxu0
      %1452 = vdwg.mxu0
      %v1454 = vsel %vm1360, %v1042, 0
      %v1457 = vsel %vm1360, %v1192, 0
      %1459 = vmatprep.subr.bf16.mxu0 0
      %1460 = vmatpush1.bf16.xpose.msra.mxu0 %v1457
      %1461 = vmatprep.subr.bf16.mxu0 0
      %1462 = vmatpush1.bf16.xpose.msra.mxu0 0
      %1463 = vmatprep.subr.bf16.mxu0 0
      %1464 = vmatpush1.bf16.xpose.msra.mxu0 0
      %1465 = vmatprep.subr.bf16.mxu0 0
      %1466 = vmatpush1.bf16.xpose.msra.mxu0 0
      %1467 = vmatprep.subr.bf16.mxu0 0
      %1468 = vmatpush1.bf16.xpose.msra.mxu0 0
      %1469 = vmatprep.subr.bf16.mxu0 0
      %1470 = vmatpush1.bf16.xpose.msra.mxu0 0
      %1471 = vmatprep.subr.bf16.mxu0 0
      %1472 = vmatpush1.bf16.xpose.msra.mxu0 0
      %1473 = vmatprep.subr.bf16.mxu0 0
      %1474 = vmatpush1.bf16.xpose.msra.mxu0 0
      %1475 = vmatprep.subr.bf16.mxu0 0
      %1476 = vmatpush1.bf16.xpose.msra.mxu0 0
      %1477 = vmatprep.subr.bf16.mxu0 0
      %1478 = vmatpush1.bf16.xpose.msra.mxu0 0
      %1479 = vmatprep.subr.bf16.mxu0 0
      %1480 = vmatpush1.bf16.xpose.msra.mxu0 0
      %1481 = vmatprep.subr.bf16.mxu0 0
      %1482 = vmatpush1.bf16.xpose.msra.mxu0 0
      %1483 = vmatprep.subr.bf16.mxu0 0
      %1484 = vmatpush1.bf16.xpose.msra.mxu0 0
      %1485 = vmatprep.subr.bf16.mxu0 0
      %1486 = vmatpush1.bf16.xpose.msra.mxu0 0
      %1487 = vmatprep.subr.bf16.mxu0 0
      %1488 = vmatpush1.bf16.xpose.msra.mxu0 0
      %1489 = vmatprep.subr.bf16.mxu0 0
      %1490 = vmatpush1.bf16.xpose.msra.mxu0 0
      %1491 = vmatprep.mubr.bf16.mxu0 0
      %1492 = vmatmul.mubr.bf16.gmra.mrb[0].mxu0 %v1454
      %v1493 = vpop.f32.mrb[0].mxu0
      %v1494 = vadd.f32 %v1359, %v1493
      %v1495 = vpop.f32.mrb[0].mxu0
      %v1496 = vpop.f32.mrb[0].mxu0
      %v1497 = vpop.f32.mrb[0].mxu0
      %1498 = vdwg.mxu0
      %v1500 = vsel %vm1360, %v1043, 0
      %v1503 = vsel %vm1360, %v1193, 0
      %1505 = vmatprep.subr.bf16.mxu0 0
      %1506 = vmatpush1.bf16.xpose.msra.mxu0 %v1503
      %1507 = vmatprep.subr.bf16.mxu0 0
      %1508 = vmatpush1.bf16.xpose.msra.mxu0 0
      %1509 = vmatprep.subr.bf16.mxu0 0
      %1510 = vmatpush1.bf16.xpose.msra.mxu0 0
      %1511 = vmatprep.subr.bf16.mxu0 0
      %1512 = vmatpush1.bf16.xpose.msra.mxu0 0
      %1513 = vmatprep.subr.bf16.mxu0 0
      %1514 = vmatpush1.bf16.xpose.msra.mxu0 0
      %1515 = vmatprep.subr.bf16.mxu0 0
      %1516 = vmatpush1.bf16.xpose.msra.mxu0 0
      %1517 = vmatprep.subr.bf16.mxu0 0
      %1518 = vmatpush1.bf16.xpose.msra.mxu0 0
      %1519 = vmatprep.subr.bf16.mxu0 0
      %1520 = vmatpush1.bf16.xpose.msra.mxu0 0
      %1521 = vmatprep.subr.bf16.mxu0 0
      %1522 = vmatpush1.bf16.xpose.msra.mxu0 0
      %1523 = vmatprep.subr.bf16.mxu0 0
      %1524 = vmatpush1.bf16.xpose.msra.mxu0 0
      %1525 = vmatprep.subr.bf16.mxu0 0
      %1526 = vmatpush1.bf16.xpose.msra.mxu0 0
      %1527 = vmatprep.subr.bf16.mxu0 0
      %1528 = vmatpush1.bf16.xpose.msra.mxu0 0
      %1529 = vmatprep.subr.bf16.mxu0 0
      %1530 = vmatpush1.bf16.xpose.msra.mxu0 0
      %1531 = vmatprep.subr.bf16.mxu0 0
      %1532 = vmatpush1.bf16.xpose.msra.mxu0 0
      %1533 = vmatprep.subr.bf16.mxu0 0
      %1534 = vmatpush1.bf16.xpose.msra.mxu0 0
      %1535 = vmatprep.subr.bf16.mxu0 0
      %1536 = vmatpush1.bf16.xpose.msra.mxu0 0
      %1537 = vmatprep.mubr.bf16.mxu0 0
      %1538 = vmatmul.mubr.bf16.gmra.mrb[0].mxu0 %v1500
      %v1539 = vpop.f32.mrb[0].mxu0
      %v1540 = vadd.f32 %v1359, %v1539
      %v1541 = vpop.f32.mrb[0].mxu0
      %v1542 = vpop.f32.mrb[0].mxu0
      %v1543 = vpop.f32.mrb[0].mxu0
      %1544 = vdwg.mxu0
      %v1545 = vsel %vm1360, %v1402, -inf
      %1546 = vmax.xlane.f32.xlu0 %v1545
      %v1547 = vpop.xlane.xlu0 %1546
      %v1548 = vsel %vm1360, %v1448, -inf
      %1549 = vmax.xlane.f32.xlu0 %v1548
      %v1550 = vpop.xlane.xlu0 %1549
      %v1551 = vsel %vm1360, %v1494, -inf
      %1552 = vmax.xlane.f32.xlu0 %v1551
      %v1553 = vpop.xlane.xlu0 %1552
      %v1554 = vsel %vm1360, %v1540, -inf
      %1555 = vmax.xlane.f32.xlu0 %v1554
      %v1556 = vpop.xlane.xlu0 %1555
      %v1557 = vsub.f32 %v1402, %v1547
      %v1558 = vsub.f32 %v1448, %v1550
      %v1559 = vsub.f32 %v1494, %v1553
      %v1560 = vsub.f32 %v1540, %v1556
      %v1561 = vpack.c.bf16 %v1557, %v1557
      %v1562 = vpack.c.bf16 %v1558, %v1558
      %v1563 = vpack.c.bf16 %v1559, %v1559
      %v1564 = vpack.c.bf16 %v1560, %v1560
      %v1566 = vmul.bf16 %v1561, 1069105081
      %v1567 = vpow.bf16.pop %v1566
      %v1569 = vmul.bf16 %v1562, 1069105081
      %v1570 = vpow.bf16.pop %v1569
      %v1572 = vmul.bf16 %v1563, 1069105081
      %v1573 = vpow.bf16.pop %v1572
      %v1575 = vmul.bf16 %v1564, 1069105081
      %v1576 = vpow.bf16.pop %v1575
      %v1577 = vunpack.c.l.bf16 %v1567
      %v1578 = vunpack.c.l.bf16 %v1570
      %v1579 = vunpack.c.l.bf16 %v1573
      %v1580 = vunpack.c.l.bf16 %v1576
      %v1581 = vsel %vm1360, %v1577, 0.0
      %1582 = vadd.xlane.f32.xlu0 %v1581
      %v1583 = vpop.xlane.xlu0 %1582
      %v1584 = vsel %vm1360, %v1578, 0.0
      %1585 = vadd.xlane.f32.xlu0 %v1584
      %v1586 = vpop.xlane.xlu0 %1585
      %v1587 = vsel %vm1360, %v1579, 0.0
      %1588 = vadd.xlane.f32.xlu0 %v1587
      %v1589 = vpop.xlane.xlu0 %1588
      %v1590 = vsel %vm1360, %v1580, 0.0
      %1591 = vadd.xlane.f32.xlu0 %v1590
      %v1592 = vpop.xlane.xlu0 %1591
      %v1593 = vrcp.pop %v1583
      %v1594 = vrcp.pop %v1586
      %v1595 = vrcp.pop %v1589
      %v1596 = vrcp.pop %v1592
      %v1597 = vpack.c.bf16 %v1593, %v1593
      %v1598 = vpack.c.bf16 %v1594, %v1594
      %v1599 = vpack.c.bf16 %v1595, %v1595
      %v1600 = vpack.c.bf16 %v1596, %v1596
      %v1601 = vmul.bf16 %v1567, %v1597
      %v1602 = vmul.bf16 %v1570, %v1598
      %v1603 = vmul.bf16 %v1573, %v1599
      %v1604 = vmul.bf16 %v1576, %v1600
      %v1606 = vsel %vm1360, %v1601, 0
      %vm1608 = vcmask 1043456
      %v1610 = vsel %vm1608, %v1340, 0
      %1612 = vmatprep.subr.bf16.mxu0 0
      %1613 = vmatpush1.bf16.msra.mxu0 %v1610
      %1614 = vmatprep.subr.bf16.mxu0 0
      %1615 = vmatpush1.bf16.msra.mxu0 0
      %1616 = vmatprep.subr.bf16.mxu0 0
      %1617 = vmatpush1.bf16.msra.mxu0 0
      %1618 = vmatprep.subr.bf16.mxu0 0
      %1619 = vmatpush1.bf16.msra.mxu0 0
      %1620 = vmatprep.subr.bf16.mxu0 0
      %1621 = vmatpush1.bf16.msra.mxu0 0
      %1622 = vmatprep.subr.bf16.mxu0 0
      %1623 = vmatpush1.bf16.msra.mxu0 0
      %1624 = vmatprep.subr.bf16.mxu0 0
      %1625 = vmatpush1.bf16.msra.mxu0 0
      %1626 = vmatprep.subr.bf16.mxu0 0
      %1627 = vmatpush1.bf16.msra.mxu0 0
      %1628 = vmatprep.subr.bf16.mxu0 0
      %1629 = vmatpush1.bf16.msra.mxu0 0
      %1630 = vmatprep.subr.bf16.mxu0 0
      %1631 = vmatpush1.bf16.msra.mxu0 0
      %1632 = vmatprep.subr.bf16.mxu0 0
      %1633 = vmatpush1.bf16.msra.mxu0 0
      %1634 = vmatprep.subr.bf16.mxu0 0
      %1635 = vmatpush1.bf16.msra.mxu0 0
      %1636 = vmatprep.subr.bf16.mxu0 0
      %1637 = vmatpush1.bf16.msra.mxu0 0
      %1638 = vmatprep.subr.bf16.mxu0 0
      %1639 = vmatpush1.bf16.msra.mxu0 0
      %1640 = vmatprep.subr.bf16.mxu0 0
      %1641 = vmatpush1.bf16.msra.mxu0 0
      %1642 = vmatprep.subr.bf16.mxu0 0
      %1643 = vmatpush1.bf16.msra.mxu0 0
      %1644 = vmatprep.mubr.bf16.mxu0 0
      %1645 = vmatmul.mubr.bf16.gmra.mrb[0].mxu0 %v1606
      %v1646 = vpop.f32.mrb[0].mxu0
      %v1647 = vadd.f32 0.0, %v1646
      %v1648 = vpop.f32.mrb[0].mxu0
      %v1649 = vpop.f32.mrb[0].mxu0
      %v1650 = vpop.f32.mrb[0].mxu0
      %1651 = vdwg.mxu0
      %v1653 = vsel %vm1360, %v1602, 0
      %v1656 = vsel %vm1608, %v1341, 0
      %1658 = vmatprep.subr.bf16.mxu0 0
      %1659 = vmatpush1.bf16.msra.mxu0 %v1656
      %1660 = vmatprep.subr.bf16.mxu0 0
      %1661 = vmatpush1.bf16.msra.mxu0 0
      %1662 = vmatprep.subr.bf16.mxu0 0
      %1663 = vmatpush1.bf16.msra.mxu0 0
      %1664 = vmatprep.subr.bf16.mxu0 0
      %1665 = vmatpush1.bf16.msra.mxu0 0
      %1666 = vmatprep.subr.bf16.mxu0 0
      %1667 = vmatpush1.bf16.msra.mxu0 0
      %1668 = vmatprep.subr.bf16.mxu0 0
      %1669 = vmatpush1.bf16.msra.mxu0 0
      %1670 = vmatprep.subr.bf16.mxu0 0
      %1671 = vmatpush1.bf16.msra.mxu0 0
      %1672 = vmatprep.subr.bf16.mxu0 0
      %1673 = vmatpush1.bf16.msra.mxu0 0
      %1674 = vmatprep.subr.bf16.mxu0 0
      %1675 = vmatpush1.bf16.msra.mxu0 0
      %1676 = vmatprep.subr.bf16.mxu0 0
      %1677 = vmatpush1.bf16.msra.mxu0 0
      %1678 = vmatprep.subr.bf16.mxu0 0
      %1679 = vmatpush1.bf16.msra.mxu0 0
      %1680 = vmatprep.subr.bf16.mxu0 0
      %1681 = vmatpush1.bf16.msra.mxu0 0
      %1682 = vmatprep.subr.bf16.mxu0 0
      %1683 = vmatpush1.bf16.msra.mxu0 0
      %1684 = vmatprep.subr.bf16.mxu0 0
      %1685 = vmatpush1.bf16.msra.mxu0 0
      %1686 = vmatprep.subr.bf16.mxu0 0
      %1687 = vmatpush1.bf16.msra.mxu0 0
      %1688 = vmatprep.subr.bf16.mxu0 0
      %1689 = vmatpush1.bf16.msra.mxu0 0
      %1690 = vmatprep.mubr.bf16.mxu0 0
      %1691 = vmatmul.mubr.bf16.gmra.mrb[0].mxu0 %v1653
      %v1692 = vpop.f32.mrb[0].mxu0
      %v1693 = vadd.f32 0.0, %v1692
      %v1694 = vpop.f32.mrb[0].mxu0
      %v1695 = vpop.f32.mrb[0].mxu0
      %v1696 = vpop.f32.mrb[0].mxu0
      %1697 = vdwg.mxu0
      %v1699 = vsel %vm1360, %v1603, 0
      %v1702 = vsel %vm1608, %v1342, 0
      %1704 = vmatprep.subr.bf16.mxu0 0
      %1705 = vmatpush1.bf16.msra.mxu0 %v1702
      %1706 = vmatprep.subr.bf16.mxu0 0
      %1707 = vmatpush1.bf16.msra.mxu0 0
      %1708 = vmatprep.subr.bf16.mxu0 0
      %1709 = vmatpush1.bf16.msra.mxu0 0
      %1710 = vmatprep.subr.bf16.mxu0 0
      %1711 = vmatpush1.bf16.msra.mxu0 0
      %1712 = vmatprep.subr.bf16.mxu0 0
      %1713 = vmatpush1.bf16.msra.mxu0 0
      %1714 = vmatprep.subr.bf16.mxu0 0
      %1715 = vmatpush1.bf16.msra.mxu0 0
      %1716 = vmatprep.subr.bf16.mxu0 0
      %1717 = vmatpush1.bf16.msra.mxu0 0
      %1718 = vmatprep.subr.bf16.mxu0 0
      %1719 = vmatpush1.bf16.msra.mxu0 0
      %1720 = vmatprep.subr.bf16.mxu0 0
      %1721 = vmatpush1.bf16.msra.mxu0 0
      %1722 = vmatprep.subr.bf16.mxu0 0
      %1723 = vmatpush1.bf16.msra.mxu0 0
      %1724 = vmatprep.subr.bf16.mxu0 0
      %1725 = vmatpush1.bf16.msra.mxu0 0
      %1726 = vmatprep.subr.bf16.mxu0 0
      %1727 = vmatpush1.bf16.msra.mxu0 0
      %1728 = vmatprep.subr.bf16.mxu0 0
      %1729 = vmatpush1.bf16.msra.mxu0 0
      %1730 = vmatprep.subr.bf16.mxu0 0
      %1731 = vmatpush1.bf16.msra.mxu0 0
      %1732 = vmatprep.subr.bf16.mxu0 0
      %1733 = vmatpush1.bf16.msra.mxu0 0
      %1734 = vmatprep.subr.bf16.mxu0 0
      %1735 = vmatpush1.bf16.msra.mxu0 0
      %1736 = vmatprep.mubr.bf16.mxu0 0
      %1737 = vmatmul.mubr.bf16.gmra.mrb[0].mxu0 %v1699
      %v1738 = vpop.f32.mrb[0].mxu0
      %v1739 = vadd.f32 0.0, %v1738
      %v1740 = vpop.f32.mrb[0].mxu0
      %v1741 = vpop.f32.mrb[0].mxu0
      %v1742 = vpop.f32.mrb[0].mxu0
      %1743 = vdwg.mxu0
      %v1745 = vsel %vm1360, %v1604, 0
      %v1748 = vsel %vm1608, %v1343, 0
      %1750 = vmatprep.subr.bf16.mxu0 0
      %1751 = vmatpush1.bf16.msra.mxu0 %v1748
      %1752 = vmatprep.subr.bf16.mxu0 0
      %1753 = vmatpush1.bf16.msra.mxu0 0
      %1754 = vmatprep.subr.bf16.mxu0 0
      %1755 = vmatpush1.bf16.msra.mxu0 0
      %1756 = vmatprep.subr.bf16.mxu0 0
      %1757 = vmatpush1.bf16.msra.mxu0 0
      %1758 = vmatprep.subr.bf16.mxu0 0
      %1759 = vmatpush1.bf16.msra.mxu0 0
      %1760 = vmatprep.subr.bf16.mxu0 0
      %1761 = vmatpush1.bf16.msra.mxu0 0
      %1762 = vmatprep.subr.bf16.mxu0 0
      %1763 = vmatpush1.bf16.msra.mxu0 0
      %1764 = vmatprep.subr.bf16.mxu0 0
      %1765 = vmatpush1.bf16.msra.mxu0 0
      %1766 = vmatprep.subr.bf16.mxu0 0
      %1767 = vmatpush1.bf16.msra.mxu0 0
      %1768 = vmatprep.subr.bf16.mxu0 0
      %1769 = vmatpush1.bf16.msra.mxu0 0
      %1770 = vmatprep.subr.bf16.mxu0 0
      %1771 = vmatpush1.bf16.msra.mxu0 0
      %1772 = vmatprep.subr.bf16.mxu0 0
      %1773 = vmatpush1.bf16.msra.mxu0 0
      %1774 = vmatprep.subr.bf16.mxu0 0
      %1775 = vmatpush1.bf16.msra.mxu0 0
      %1776 = vmatprep.subr.bf16.mxu0 0
      %1777 = vmatpush1.bf16.msra.mxu0 0
      %1778 = vmatprep.subr.bf16.mxu0 0
      %1779 = vmatpush1.bf16.msra.mxu0 0
      %1780 = vmatprep.subr.bf16.mxu0 0
      %1781 = vmatpush1.bf16.msra.mxu0 0
      %1782 = vmatprep.mubr.bf16.mxu0 0
      %1783 = vmatmul.mubr.bf16.gmra.mrb[0].mxu0 %v1745
      %v1784 = vpop.f32.mrb[0].mxu0
      %v1785 = vadd.f32 0.0, %v1784
      %v1786 = vpop.f32.mrb[0].mxu0
      %v1787 = vpop.f32.mrb[0].mxu0
      %v1788 = vpop.f32.mrb[0].mxu0
      %1789 = vdwg.mxu0
      %v1790 = vcombine.low %v1647, %v1739
      %v1791 = vcombine.high %v1647, %v1739
      %v1793 = vunpack.c.l.s4 1983009808
      %v1794 = vunpack.c.0.s8 %v1793
      %v1795 = vlaneseq
      %v1796 = vshrl.u32 %v1795, 7
      %v1797 = vsub.s32 %v1794, %v1796
      %v1798 = vrot.slane %v1790, %v1797
      %v1800 = vunpack.c.l.s4 1983009808
      %v1801 = vunpack.c.0.s8 %v1800
      %v1802 = vlaneseq
      %v1803 = vshrl.u32 %v1802, 7
      %v1804 = vsub.s32 %v1801, %v1803
      %v1805 = vrot.slane %v1791, %v1804
      %v1806 = vcombine.low %v1693, %v1785
      %v1807 = vcombine.high %v1693, %v1785
      %v1809 = vunpack.c.l.s4 1983009808
      %v1810 = vunpack.c.0.s8 %v1809
      %v1811 = vlaneseq
      %v1812 = vshrl.u32 %v1811, 7
      %v1813 = vsub.s32 %v1810, %v1812
      %v1814 = vrot.slane %v1806, %v1813
      %v1816 = vunpack.c.l.s4 1983009808
      %v1817 = vunpack.c.0.s8 %v1816
      %v1818 = vlaneseq
      %v1819 = vshrl.u32 %v1818, 7
      %v1820 = vsub.s32 %v1817, %v1819
      %v1821 = vrot.slane %v1807, %v1820
      %v1822 = vcombine.low %v1798, %v1814
      %v1823 = vcombine.high %v1798, %v1814
      %v1825 = vunpack.c.l.s4 1934713408
      %v1826 = vunpack.c.0.s8 %v1825
      %v1827 = vlaneseq
      %v1828 = vshrl.u32 %v1827, 7
      %v1829 = vsub.s32 %v1826, %v1828
      %v1830 = vrot.slane %v1822, %v1829
      %v1832 = vunpack.c.l.s4 1934713408
      %v1833 = vunpack.c.0.s8 %v1832
      %v1834 = vlaneseq
      %v1835 = vshrl.u32 %v1834, 7
      %v1836 = vsub.s32 %v1833, %v1835
      %v1837 = vrot.slane %v1823, %v1836
      %v1838 = vcombine.low %v1805, %v1821
      %v1839 = vcombine.high %v1805, %v1821
      %v1841 = vunpack.c.l.s4 1934713408
      %v1842 = vunpack.c.0.s8 %v1841
      %v1843 = vlaneseq
      %v1844 = vshrl.u32 %v1843, 7
      %v1845 = vsub.s32 %v1842, %v1844
      %v1846 = vrot.slane %v1838, %v1845
      %v1848 = vunpack.c.l.s4 1934713408
      %v1849 = vunpack.c.0.s8 %v1848
      %v1850 = vlaneseq
      %v1851 = vshrl.u32 %v1850, 7
      %v1852 = vsub.s32 %v1849, %v1851
      %v1853 = vrot.slane %v1839, %v1852
      %v1854 = vcombine.high %v1830, 0.0
      %v1855 = vcombine.high %v1837, 0.0
      %v1856 = vcombine.high %v1846, 0.0
      %v1857 = vcombine.high %v1853, 0.0
      %v1858 = vcombine.low %v1830, %v1837
      %v1860 = vunpack.c.l.s4 1983009808
      %v1861 = vunpack.c.0.s8 %v1860
      %v1862 = vlaneseq
      %v1863 = vshrl.u32 %v1862, 7
      %v1864 = vsub.s32 %v1861, %v1863
      %v1865 = vrot.slane %v1858, %v1864
      %v1866 = vcombine.low %v1854, %v1855
      %v1868 = vunpack.c.l.s4 1983009808
      %v1869 = vunpack.c.0.s8 %v1868
      %v1870 = vlaneseq
      %v1871 = vshrl.u32 %v1870, 7
      %v1872 = vsub.s32 %v1869, %v1871
      %v1873 = vrot.slane %v1866, %v1872
      %v1874 = vcombine.low %v1846, %v1853
      %v1876 = vunpack.c.l.s4 1983009808
      %v1877 = vunpack.c.0.s8 %v1876
      %v1878 = vlaneseq
      %v1879 = vshrl.u32 %v1878, 7
      %v1880 = vsub.s32 %v1877, %v1879
      %v1881 = vrot.slane %v1874, %v1880
      %v1882 = vcombine.low %v1856, %v1857
      %v1884 = vunpack.c.l.s4 1983009808
      %v1885 = vunpack.c.0.s8 %v1884
      %v1886 = vlaneseq
      %v1887 = vshrl.u32 %v1886, 7
      %v1888 = vsub.s32 %v1885, %v1887
      %v1889 = vrot.slane %v1882, %v1888
      %v1890 = vcombine.low %v1865, %v1873
      %v1891 = vcombine.high %v1865, %v1873
      %v1893 = vunpack.c.l.s4 1934713408
      %v1894 = vunpack.c.0.s8 %v1893
      %v1895 = vlaneseq
      %v1896 = vshrl.u32 %v1895, 7
      %v1897 = vsub.s32 %v1894, %v1896
      %v1898 = vrot.slane %v1890, %v1897
      %v1900 = vunpack.c.l.s4 1934713408
      %v1901 = vunpack.c.0.s8 %v1900
      %v1902 = vlaneseq
      %v1903 = vshrl.u32 %v1902, 7
      %v1904 = vsub.s32 %v1901, %v1903
      %v1905 = vrot.slane %v1891, %v1904
      %v1906 = vcombine.low %v1881, %v1889
      %v1907 = vcombine.high %v1881, %v1889
      %v1909 = vunpack.c.l.s4 1934713408
      %v1910 = vunpack.c.0.s8 %v1909
      %v1911 = vlaneseq
      %v1912 = vshrl.u32 %v1911, 7
      %v1913 = vsub.s32 %v1910, %v1912
      %v1914 = vrot.slane %v1906, %v1913
      %v1916 = vunpack.c.l.s4 1934713408
      %v1917 = vunpack.c.0.s8 %v1916
      %v1918 = vlaneseq
      %v1919 = vshrl.u32 %v1918, 7
      %v1920 = vsub.s32 %v1917, %v1919
      %v1921 = vrot.slane %v1907, %v1920
      %v1922 = vcombine.low %v1898, %v1914
      %v1923 = vcombine.high %v1898, %v1914
      %v1924 = vcombine.low %v1905, %v1921
      %v1925 = vcombine.high %v1905, %v1921
      %1927 = vrot.lane.b32.xlu0 %v1923, 8
      %v1928 = vpop.permute.xlu0 %1927
      %1931 = vrot.lane.b32.xlu0 %v1924, 16
      %v1932 = vpop.permute.xlu0 %1931
      %1935 = vrot.lane.b32.xlu0 %v1925, 24
      %v1936 = vpop.permute.xlu0 %1935
      %v1938 = vsel %vm1360, %v1922, %v1928
      %vm1939 = vcmask 130048
      %v1940 = vsel %vm1939, %v1938, %v1932
      %vm1941 = vcmask 195584
      %v1942 = vsel %vm1941, %v1940, %v1936
      %v1943 = vpack.c.bf16 %v1942, %v1942
      %v1944 = vld [vmem:[%s11] sm:$0xf]
      %v1945 = vld [vmem:[%s11 + $0x4] sm:$0xf]
      %v1946 = vld [vmem:[%s11 + $0x8] sm:$0xf]
      %v1947 = vld [vmem:[%s11 + $0xc] sm:$0xf]
      %v1948 = vld [vmem:[%s12] sm:$0x1]
      %v1950 = vlaneseq
      %v1951 = vshrl.u32 %v1950, 7
      %v1952 = vsub.s32 0, %v1951
      %v1953 = vrot.slane %v1948, %v1952
      %v1959 = vunpack.c.l.b16 %v1944
      %v1960 = vunpack.c.l.b16 %v1945
      %v1961 = vunpack.c.l.b16 %v1946
      %v1962 = vunpack.c.l.b16 %v1947
      %v1963 = vpack.c.b16 %v1960, %v1959
      %v1964 = vpack.c.b16 %v1962, %v1961
      %v1968 = vsel %vm664, %v1943, 0
      %1970 = vmatprep.subr.bf16.mxu0 0
      %1971 = vmatpush1.bf16.msra.mxu0 %v1963
      %1972 = vmatprep.subr.bf16.mxu0 0
      %1973 = vmatpush1.bf16.msra.mxu0 %v1964
      %1974 = vmatprep.subr.bf16.mxu0 0
      %1975 = vmatpush1.bf16.msra.mxu0 0
      %1976 = vmatprep.subr.bf16.mxu0 0
      %1977 = vmatpush1.bf16.msra.mxu0 0
      %1978 = vmatprep.subr.bf16.mxu0 0
      %1979 = vmatpush1.bf16.msra.mxu0 0
      %1980 = vmatprep.subr.bf16.mxu0 0
      %1981 = vmatpush1.bf16.msra.mxu0 0
      %1982 = vmatprep.subr.bf16.mxu0 0
      %1983 = vmatpush1.bf16.msra.mxu0 0
      %1984 = vmatprep.subr.bf16.mxu0 0
      %1985 = vmatpush1.bf16.msra.mxu0 0
      %1986 = vmatprep.subr.bf16.mxu0 0
      %1987 = vmatpush1.bf16.msra.mxu0 0
      %1988 = vmatprep.subr.bf16.mxu0 0
      %1989 = vmatpush1.bf16.msra.mxu0 0
      %1990 = vmatprep.subr.bf16.mxu0 0
      %1991 = vmatpush1.bf16.msra.mxu0 0
      %1992 = vmatprep.subr.bf16.mxu0 0
      %1993 = vmatpush1.bf16.msra.mxu0 0
      %1994 = vmatprep.subr.bf16.mxu0 0
      %1995 = vmatpush1.bf16.msra.mxu0 0
      %1996 = vmatprep.subr.bf16.mxu0 0
      %1997 = vmatpush1.bf16.msra.mxu0 0
      %1998 = vmatprep.subr.bf16.mxu0 0
      %1999 = vmatpush1.bf16.msra.mxu0 0
      %2000 = vmatprep.subr.bf16.mxu0 0
      %2001 = vmatpush1.bf16.msra.mxu0 0
      %2002 = vmatprep.mubr.bf16.mxu0 0
      %2003 = vmatmul.mubr.bf16.gmra.mrb[0].mxu0 %v1968
      %v2004 = vpop.f32.mrb[0].mxu0
      %v2005 = vadd.f32 %v1953, %v2004
      %v2006 = vpop.f32.mrb[0].mxu0
      %v2007 = vpop.f32.mrb[0].mxu0
      %v2008 = vpop.f32.mrb[0].mxu0
      %2009 = vdwg.mxu0
      %v2010 = vadd.f32 %v661, %v2005
      %v2011 = vld [vmem:[%s13] sm:$0x1]
      %v2012 = vld [vmem:[%s14] sm:$0x1]
      %v2013 = vsel %vm664, %v2010, 0.0
      %2014 = vadd.xlane.f32.xlu0 %v2013
      %v2015 = vpop.xlane.xlu0 %2014
      %v2016 = vmul.f32 %v2015, %v668
      %v2017 = vsub.f32 %v2010, %v2016
      %v2018 = vmul.f32 %v2017, %v2017
      %v2019 = vsel %vm664, %v2018, 0.0
      %2020 = vadd.xlane.f32.xlu0 %v2019
      %v2021 = vpop.xlane.xlu0 %2020
      %v2022 = vmul.f32 %v2021, 0.032258064
      %v2023 = vrsqrt.pop %v2022
      %v2024 = vmul.f32 %v2022, %v2023
      %vm2025 = vcmp.eq.f32.partialorder %v2022, inf
      %v2026 = vsel %vm2025, %v2022, %v2024
      %vm2027 = vcmp.eq.f32.partialorder %v2022, 0.0
      %v2028 = vand.u32 %v2022, 2147483648
      %v2029 = vsel %vm2027, %v2028, %v2026
      %v2030 = vadd.f32 %v2029, 1e-06
      %v2031 = vrcp.pop %v2030
      %v2033 = vlaneseq
      %v2034 = vshrl.u32 %v2033, 7
      %v2035 = vsub.s32 0, %v2034
      %v2036 = vrot.slane %v2011, %v2035
      %v2038 = vmul.f32 %v2036, %v2017
      %v2039 = vmul.f32 %v2038, %v2031
      %v2041 = vlaneseq
      %v2042 = vshrl.u32 %v2041, 7
      %v2043 = vsub.s32 0, %v2042
      %v2044 = vrot.slane %v2012, %v2043
      %v2046 = vadd.f32 %v2039, %v2044
      %v2047 = vpack.c.bf16 %v2046, %v2046
      %v2048 = vld [vmem:[%s15] sm:$0xf]
      %v2049 = vld [vmem:[%s15 + $0x4] sm:$0xf]
      %v2050 = vld [vmem:[%s15 + $0x8] sm:$0xf]
      %v2051 = vld [vmem:[%s15 + $0xc] sm:$0xf]
      %v2052 = vld [vmem:[%s16] sm:$0x1]
      %v2054 = vlaneseq
      %v2055 = vshrl.u32 %v2054, 7
      %v2056 = vsub.s32 0, %v2055
      %v2057 = vrot.slane %v2052, %v2056
      %v2063 = vunpack.c.l.b16 %v2048
      %v2064 = vunpack.c.l.b16 %v2049
      %v2065 = vunpack.c.l.b16 %v2050
      %v2066 = vunpack.c.l.b16 %v2051
      %v2067 = vpack.c.b16 %v2064, %v2063
      %v2068 = vpack.c.b16 %v2066, %v2065
      %v2072 = vsel %vm664, %v2047, 0
      %2074 = vmatprep.subr.bf16.mxu0 0
      %2075 = vmatpush1.bf16.msra.mxu0 %v2067
      %2076 = vmatprep.subr.bf16.mxu0 0
      %2077 = vmatpush1.bf16.msra.mxu0 %v2068
      %2078 = vmatprep.subr.bf16.mxu0 0
      %2079 = vmatpush1.bf16.msra.mxu0 0
      %2080 = vmatprep.subr.bf16.mxu0 0
      %2081 = vmatpush1.bf16.msra.mxu0 0
      %2082 = vmatprep.subr.bf16.mxu0 0
      %2083 = vmatpush1.bf16.msra.mxu0 0
      %2084 = vmatprep.subr.bf16.mxu0 0
      %2085 = vmatpush1.bf16.msra.mxu0 0
      %2086 = vmatprep.subr.bf16.mxu0 0
      %2087 = vmatpush1.bf16.msra.mxu0 0
      %2088 = vmatprep.subr.bf16.mxu0 0
      %2089 = vmatpush1.bf16.msra.mxu0 0
      %2090 = vmatprep.subr.bf16.mxu0 0
      %2091 = vmatpush1.bf16.msra.mxu0 0
      %2092 = vmatprep.subr.bf16.mxu0 0
      %2093 = vmatpush1.bf16.msra.mxu0 0
      %2094 = vmatprep.subr.bf16.mxu0 0
      %2095 = vmatpush1.bf16.msra.mxu0 0
      %2096 = vmatprep.subr.bf16.mxu0 0
      %2097 = vmatpush1.bf16.msra.mxu0 0
      %2098 = vmatprep.subr.bf16.mxu0 0
      %2099 = vmatpush1.bf16.msra.mxu0 0
      %2100 = vmatprep.subr.bf16.mxu0 0
      %2101 = vmatpush1.bf16.msra.mxu0 0
      %2102 = vmatprep.subr.bf16.mxu0 0
      %2103 = vmatpush1.bf16.msra.mxu0 0
      %2104 = vmatprep.subr.bf16.mxu0 0
      %2105 = vmatpush1.bf16.msra.mxu0 0
      %2106 = vmatprep.mubr.bf16.mxu0 0
      %2107 = vmatmul.mubr.bf16.gmra.mrb[0].mxu0 %v2072
      %v2108 = vpop.f32.mrb[0].mxu0
      %v2109 = vadd.f32 %v2057, %v2108
      %v2110 = vpop.f32.mrb[0].mxu0
      %v2111 = vpop.f32.mrb[0].mxu0
      %v2112 = vpop.f32.mrb[0].mxu0
      %2113 = vdwg.mxu0
      %v2114 = vmul.f32 %v2109, 0.5
      %v2115 = vmul.f32 %v2109, 0.044715
      %v2116 = vmul.f32 %v2115, %v2109
      %v2117 = vmul.f32 %v2116, %v2109
      %v2118 = vadd.f32 %v2109, %v2117
      %v2119 = vmul.f32 %v2118, 0.7978846
      %v2120 = vtanh.pop %v2119
      %v2121 = vadd.f32 %v2120, 1.0
      %v2122 = vmul.f32 %v2114, %v2121
      %v2123 = vpack.c.bf16 %v2122, %v2122
      %v2124 = vld [vmem:[%s17] sm:$0xf]
      %v2125 = vld [vmem:[%s17 + $0x4] sm:$0xf]
      %v2126 = vld [vmem:[%s17 + $0x8] sm:$0xf]
      %v2127 = vld [vmem:[%s17 + $0xc] sm:$0xf]
      %v2128 = vld [vmem:[%s17 + $0x10] sm:$0xf]
      %v2129 = vld [vmem:[%s17 + $0x14] sm:$0xf]
      %v2130 = vld [vmem:[%s17 + $0x18] sm:$0xf]
      %v2131 = vld [vmem:[%s17 + $0x1c] sm:$0xf]
      %v2132 = vld [vmem:[%s17 + $0x20] sm:$0xf]
      %v2133 = vld [vmem:[%s17 + $0x24] sm:$0xf]
      %v2134 = vld [vmem:[%s17 + $0x28] sm:$0xf]
      %v2135 = vld [vmem:[%s17 + $0x2c] sm:$0xf]
      %v2136 = vld [vmem:[%s17 + $0x30] sm:$0xf]
      %v2137 = vld [vmem:[%s17 + $0x34] sm:$0xf]
      %v2138 = vld [vmem:[%s17 + $0x38] sm:$0xf]
      %v2139 = vld [vmem:[%s17 + $0x3c] sm:$0xf]
      %v2140 = vld [vmem:[%s18] sm:$0x1]
      %v2142 = vlaneseq
      %v2143 = vshrl.u32 %v2142, 7
      %v2144 = vsub.s32 0, %v2143
      %v2145 = vrot.slane %v2140, %v2144
      %v2163 = vunpack.c.l.b16 %v2124
      %v2164 = vunpack.c.l.b16 %v2125
      %v2165 = vunpack.c.l.b16 %v2126
      %v2166 = vunpack.c.l.b16 %v2127
      %v2167 = vunpack.c.l.b16 %v2128
      %v2168 = vunpack.c.l.b16 %v2129
      %v2169 = vunpack.c.l.b16 %v2130
      %v2170 = vunpack.c.l.b16 %v2131
      %v2171 = vunpack.c.l.b16 %v2132
      %v2172 = vunpack.c.l.b16 %v2133
      %v2173 = vunpack.c.l.b16 %v2134
      %v2174 = vunpack.c.l.b16 %v2135
      %v2175 = vunpack.c.l.b16 %v2136
      %v2176 = vunpack.c.l.b16 %v2137
      %v2177 = vunpack.c.l.b16 %v2138
      %v2178 = vunpack.c.l.b16 %v2139
      %v2179 = vpack.c.b16 %v2164, %v2163
      %v2180 = vpack.c.b16 %v2166, %v2165
      %v2181 = vpack.c.b16 %v2168, %v2167
      %v2182 = vpack.c.b16 %v2170, %v2169
      %v2183 = vpack.c.b16 %v2172, %v2171
      %v2184 = vpack.c.b16 %v2174, %v2173
      %v2185 = vpack.c.b16 %v2176, %v2175
      %v2186 = vpack.c.b16 %v2178, %v2177
      %2195 = vmatprep.subr.bf16.mxu0 0
      %2196 = vmatpush1.bf16.msra.mxu0 %v2179
      %2197 = vmatprep.subr.bf16.mxu0 0
      %2198 = vmatpush1.bf16.msra.mxu0 %v2180
      %2199 = vmatprep.subr.bf16.mxu0 0
      %2200 = vmatpush1.bf16.msra.mxu0 %v2181
      %2201 = vmatprep.subr.bf16.mxu0 0
      %2202 = vmatpush1.bf16.msra.mxu0 %v2182
      %2203 = vmatprep.subr.bf16.mxu0 0
      %2204 = vmatpush1.bf16.msra.mxu0 %v2183
      %2205 = vmatprep.subr.bf16.mxu0 0
      %2206 = vmatpush1.bf16.msra.mxu0 %v2184
      %2207 = vmatprep.subr.bf16.mxu0 0
      %2208 = vmatpush1.bf16.msra.mxu0 %v2185
      %2209 = vmatprep.subr.bf16.mxu0 0
      %2210 = vmatpush1.bf16.msra.mxu0 %v2186
      %2211 = vmatprep.subr.bf16.mxu0 0
      %2212 = vmatpush1.bf16.msra.mxu0 0
      %2213 = vmatprep.subr.bf16.mxu0 0
      %2214 = vmatpush1.bf16.msra.mxu0 0
      %2215 = vmatprep.subr.bf16.mxu0 0
      %2216 = vmatpush1.bf16.msra.mxu0 0
      %2217 = vmatprep.subr.bf16.mxu0 0
      %2218 = vmatpush1.bf16.msra.mxu0 0
      %2219 = vmatprep.subr.bf16.mxu0 0
      %2220 = vmatpush1.bf16.msra.mxu0 0
      %2221 = vmatprep.subr.bf16.mxu0 0
      %2222 = vmatpush1.bf16.msra.mxu0 0
      %2223 = vmatprep.subr.bf16.mxu0 0
      %2224 = vmatpush1.bf16.msra.mxu0 0
      %2225 = vmatprep.subr.bf16.mxu0 0
      %2226 = vmatpush1.bf16.msra.mxu0 0
      %2227 = vmatprep.mubr.bf16.mxu0 0
      %2228 = vmatmul.mubr.bf16.gmra.mrb[0].mxu0 %v2123
      %v2229 = vpop.f32.mrb[0].mxu0
      %v2230 = vadd.f32 %v2145, %v2229
      %v2231 = vpop.f32.mrb[0].mxu0
      %v2232 = vpop.f32.mrb[0].mxu0
      %v2233 = vpop.f32.mrb[0].mxu0
      %2234 = vdwg.mxu0
      %v2235 = vadd.f32 %v2010, %v2230
      %2236 = vst.msk [vmem:[%s659] sm:$0xff] %vm664, %v2235
      %p2237 = scmp.lt.s32.totalorder %s34, 1
      %s2238 = scalar_select %p2237, %s34, 1
      %p2239 = scmp.lt.s32.totalorder %s35, 0
      %s2240 = scalar_select %p2239, %s35, 0
      %s2241 = sadd.s32 %s2240, %s2238
      %s2242 = smul.addr %s2241, 8
      %s2243 = scalar_lea.vmem %s19, %s2242
      // Predicated region
      $region97: #{molbert_forward.2} parent=95 // pred_check
        %p2244 = pneg %p478
      $region98: #{molbert_forward.2} parent=95 // pred_check_branch
        %2246 = sbr.rel (%p2244) target = $region100
      $region99: #{molbert_forward.2} parent=95 // pred_region
        _
      $region100: #{molbert_forward.2} parent=95 // pred_fallthru
        _
    $region96: #{molbert_forward.2} parent=5 // pred_fallthru
      _
    %p2247 = scmp.le.s32.totalorder 2, %s25
    // Predicated region
    $region101: #{molbert_forward.2} parent=5 // pred_check
      %p2248 = pneg %p2247
    $region102: #{molbert_forward.2} parent=5 // pred_check_branch
      %2250 = sbr.rel (%p2248) target = $region104
    $region103: #{molbert_forward.2} parent=5 // pred_region
      %s2251 = ssub.s32 %s25, 2
      // Predicated region
      $region105: #{molbert_forward.2} parent=103 // pred_check
        %p2252 = pneg %p484
      $region106: #{molbert_forward.2} parent=103 // pred_check_branch
        %2254 = sbr.rel (%p2252) target = $region108
      $region107: #{molbert_forward.2} parent=103 // pred_region
        %p2255 = scmp.lt.s32.totalorder %s36, 1
        %s2256 = scalar_select %p2255, %s36, 1
        %p2257 = scmp.lt.s32.totalorder %s37, 0
        %s2258 = scalar_select %p2257, %s37, 0
        %s2259 = sadd.s32 %s2258, %s2256
        %s2260 = smul.addr %s2259, 8
        %s2261 = scalar_lea.vmem %s19, %s2260
      $region108: #{molbert_forward.2} parent=103 // pred_fallthru
        _
    $region104: #{molbert_forward.2} parent=5 // pred_fallthru
      _
  $region6: #{molbert_forward.2} parent=0 // loop_footer
    %s29 = sadd.s32 1, %s25
  $region7: #{molbert_forward.2} parent=0 // loop_footer_branch
    %24 = sbr.rel target = $region3
  $region8: #{molbert_forward.2} parent=0 // loop_exit
    _

</llo_original>
